<compile_context>
chip_gen: v7x
topology: tpu7x:2x2x1
jax: 0.10.0
libtpu: 0.0.40
codegen_flags: <defaults>
</compile_context>

<pallas_src>
import functools

import jax
import jax.numpy as jnp
from jax.experimental import pallas as pl
from jax.experimental.pallas import tpu as pltpu


# --------------------------------------------------------------------------- #
# Small helpers
# --------------------------------------------------------------------------- #
def _round_up(n, m):
    return ((n + m - 1) // m) * m


def _pad_last(a, p):
    return jnp.pad(a, [(0, 0)] * (a.ndim - 1) + [(0, p)]) if p else a


def _hw_defaults():
    """Per-core VMEM capacity and MXU M-target (generation aware)."""
    vmem_bytes = 128 * 2 ** 20
    mxu_m = 256
    try:
        info = pltpu.get_tpu_info()
        vmem_bytes = int(getattr(info, "vmem_capacity_bytes", vmem_bytes))
        ver = str(getattr(info, "chip_version", "")).lower()
        if "5" in ver:          # v5-class: 4x128 MXUs -> M=128 already full
            mxu_m = 128
    except Exception:
        pass
    vmem_bytes = max(vmem_bytes, 32 * 2 ** 20)
    return vmem_bytes, mxu_m


def _const_spec(a):
    """BlockSpec for a weight that is fetched once: whole array, single buffer."""
    nd = a.ndim
    idx = lambda *_: (0,) * nd
    try:
        return pl.BlockSpec(a.shape, idx, pipeline_mode=pl.Buffered(1))
    except TypeError:            # very old Pallas without pipeline_mode
        return pl.BlockSpec(a.shape, idx)


def _prepare_params(params, matmul_dtype):
    """Pad channel dims to multiples of 128 (lane dense) and split the GLU weight."""
    w1_t, b1 = params["w1_t"], params["b1"]
    wdw_t, bdw = params["wdw_t"], params["bdw"]
    gamma, beta = params["gamma"], params["beta"]
    w2_t, b2 = params["w2_t"], params["b2"]
    K, C = wdw_t.shape
    V = w1_t.shape[0]
    Vp, Cp = _round_up(V, 128), _round_up(C, 128)
    pv, pc = Vp - V, Cp - C

    w1a = _pad_last(jnp.pad(w1_t[:, :C], ((0, pv), (0, 0))), pc).astype(matmul_dtype)
    w1g = _pad_last(jnp.pad(w1_t[:, C:], ((0, pv), (0, 0))), pc).astype(matmul_dtype)
    b1a = _pad_last(b1[:, :C], pc).astype(jnp.float32)
    b1g = _pad_last(b1[:, C:], pc).astype(jnp.float32)
    wdw = _pad_last(wdw_t, pc).astype(jnp.float32)
    bdwp = _pad_last(bdw, pc).astype(jnp.float32)
    gammap = _pad_last(gamma, pc).astype(jnp.float32)
    betap = _pad_last(beta, pc).astype(jnp.float32)
    w2 = _pad_last(jnp.pad(w2_t, ((0, pc), (0, 0))), pv).astype(matmul_dtype)
    b2p = _pad_last(b2, pv).astype(jnp.float32)

    return {
        "weights": (w1a, w1g, b1a, b1g, wdw, bdwp, gammap, betap, w2, b2p),
        "K": K, "C": C, "V": V, "Vp": Vp, "Cp": Cp,
        "matmul_dtype": matmul_dtype,
    }


# --------------------------------------------------------------------------- #
# Plan 1: fully fused kernel (everything VMEM resident for a batch block)
# --------------------------------------------------------------------------- #
def _fused_kernel(x_ref, w1a_ref, w1g_ref, b1a_ref, b1g_ref,
                  wdw_ref, bdw_ref, gamma_ref, beta_ref, w2_ref, b2_ref,
                  o_ref, *, t_actual, c_actual, eps):
    Bt, Tp, Vp = x_ref.shape
    K, Cp = wdw_ref.shape
    M = Bt * Tp
    pad = (K - 1) // 2
    mx = w1a_ref.dtype

    # ---- pointwise conv 1 (V -> 2C) as two MXU matmuls + fused GLU ----
    x = x_ref[...].reshape(M, Vp).astype(mx)      # in-kernel cast (no-op if pre-cast)
    a = jnp.dot(x, w1a_ref[...], preferred_element_type=jnp.float32) + b1a_ref[...]
    g = jnp.dot(x, w1g_ref[...], preferred_element_type=jnp.float32) + b1g_ref[...]
    u = a * jax.nn.sigmoid(g)                     # (M, Cp) f32

    # ---- depthwise conv, 'SAME' zero padding: roll (XLU) + (M,1) edge mask ----
    t_idx = jax.lax.broadcasted_iota(jnp.int32, (M, 1), 0) % Tp
    acc = None
    for k in range(K):                            # K is a compile-time constant
        off = k - pad
        w_k = wdw_ref[k:k + 1, :]
        if off == 0:
            tap = u * w_k
        else:
            shifted = pltpu.roll(u, shift=(-off) % M, axis=0)   # row r -> u[r+off]
            if off < 0:
                valid = t_idx >= (-off)                         # has a left neighbor
            else:
                valid = t_idx < (t_actual - off)                # has a right neighbor
            tap = jnp.where(valid, shifted, 0.0) * w_k
        acc = tap if acc is None else acc + tap
    acc = acc + bdw_ref[...]                      # depthwise bias, added once
    if Tp != t_actual:                            # zero rows added by the T padding
        acc = jnp.where(t_idx < t_actual, acc, 0.0)

    # ---- GroupNorm(num_groups=1): per-sample stats from (M, 1) row sums ----
    n = float(t_actual * c_actual)
    row_s1 = jnp.sum(acc, axis=1, keepdims=True)            # (M, 1) lane reduce
    row_s2 = jnp.sum(acc * acc, axis=1, keepdims=True)
    s1 = jnp.sum(row_s1.reshape(Bt, Tp, 1), axis=1, keepdims=True)   # (Bt, 1, 1)
    s2 = jnp.sum(row_s2.reshape(Bt, Tp, 1), axis=1, keepdims=True)
    mean = s1 / n
    inv = jax.lax.rsqrt(s2 / n - mean * mean + eps)
    mean_r = jnp.broadcast_to(mean, (Bt, Tp, 1)).reshape(M, 1)
    inv_r = jnp.broadcast_to(inv, (Bt, Tp, 1)).reshape(M, 1)
    y = (acc - mean_r) * inv_r * gamma_ref[...] + beta_ref[...]

    # ---- SiLU + pointwise conv 2 (C -> V) ----
    s = y * jax.nn.sigmoid(y)
    out = jnp.dot(s.astype(mx), w2_ref[...], preferred_element_type=jnp.float32) + b2_ref[...]

    # TODO(synk): training-mode dropout not implemented (identity at inference).
    o_ref[...] = out.reshape(Bt, Tp, Vp).astype(o_ref.dtype)


def _fused_block_bytes(bt, Tp, Vp, Cp, w_bytes):
    M = bt * Tp
    return (2 * M * Vp * 4 + 2 * M * Vp * 4          # x + out blocks, double buffered
            + M * (10 * Cp + 4 * Vp) * 4             # live f32 intermediates
            + int(w_bytes))


def _choose_rows_per_block(B, Tp, mxu_m, block_bytes_fn, budget):
    target = max(1, mxu_m // max(Tp, 1))
    bt = 1
    for d in range(1, B + 1):
        if B % d == 0 and d <= target and block_bytes_fn(d) <= budget:
            bt = d
    # keep >= 2 parallel grid steps when possible (megacore / v7x 2 TCs)
    while bt > 1 and B // bt < 2:
        bt -= 1
        while bt > 1 and B % bt != 0:
            bt -= 1
    return bt


def _fused_forward(x, prep, Bt, Tp, vmem_limit, eps):
    B, T, V = x.shape
    weights = prep["weights"]
    C, Vp = prep["C"], prep["Vp"]
    mxd = prep["matmul_dtype"]

    need_pad = (Vp != V) or (Tp != T)
    if need_pad:
        # wrapper pad implies a copy anyway; cast it to the matmul dtype to
        # halve the extra HBM traffic.  When no padding is needed x goes in
        # untouched (f32) and is cast inside the kernel.
        x_in = jnp.pad(x, ((0, 0), (0, Tp - T), (0, Vp - V))).astype(mxd)
    else:
        x_in = x

    nb = B // Bt
    kernel = functools.partial(_fused_kernel, t_actual=T, c_actual=C, eps=eps)
    out = pl.pallas_call(
        kernel,
        out_shape=jax.ShapeDtypeStruct((B, Tp, Vp), x.dtype),
        grid_spec=pltpu.PrefetchScalarGridSpec(
            num_scalar_prefetch=0,
            grid=(nb,),
            in_specs=[pl.BlockSpec((Bt, Tp, Vp), lambda b: (b, 0, 0))]
                     + [_const_spec(a) for a in weights],
            out_specs=pl.BlockSpec((Bt, Tp, Vp), lambda b: (b, 0, 0))),
        compiler_params=pltpu.CompilerParams(
            dimension_semantics=("parallel",),
            vmem_limit_bytes=vmem_limit),
    )(x_in, *weights)

    if need_pad:
        out = out[:, :T, :V]
    return out


# --------------------------------------------------------------------------- #
# Plan 2: T-tiled two-pass path (bounded VMEM, >=2 parallel steps at B == 1)
# --------------------------------------------------------------------------- #
def _pass1_kernel(xl_ref, xc_ref, xr_ref, w1a_ref, w1g_ref, b1a_ref, b1g_ref,
                  wdw_ref, bdw_ref, dw_ref, stats_ref, *, t_actual, t_block, halo):
    Tt, H = t_block, halo
    K, Cp = wdw_ref.shape
    pad = (K - 1) // 2
    mx = w1a_ref.dtype
    t = pl.program_id(1)
    Me = Tt + 2 * H

    # Assemble the current x tile plus an 8-row-aligned halo from the
    # clamped neighbour tiles (the boundary rows are recomputed -> no HBM
    # intermediate for the GLU output).
    if H > 0:
        x_ext = jnp.concatenate(
            [xl_ref[0, Tt - H:, :], xc_ref[0], xr_ref[0, :H, :]], axis=0)
    else:
        x_ext = xc_ref[0]
    x_ext = x_ext.astype(mx)                                  # (Me, Vp)

    a = jnp.dot(x_ext, w1a_ref[...], preferred_element_type=jnp.float32) + b1a_ref[...]
    g = jnp.dot(x_ext, w1g_ref[...], preferred_element_type=jnp.float32) + b1g_ref[...]
    u = a * jax.nn.sigmoid(g)                                 # (Me, Cp) f32

    # Zero rows outside [0, T): implements 'SAME' zero padding of the
    # depthwise input, the clamped-neighbour halos, and any wrapper T padding.
    gidx = t * Tt - H + jax.lax.broadcasted_iota(jnp.int32, (Me, 1), 0)
    u = jnp.where((gidx >= 0) & (gidx < t_actual), u, 0.0)

    acc = None
    for k in range(K):                                        # compile-time constant
        off = k - pad                                         # output row i uses u[H+i+off]
        shift = (-(H + off)) % Me
        rolled = pltpu.roll(u, shift=shift, axis=0) if shift else u
        tap = rolled[:Tt, :] * wdw_ref[k:k + 1, :]
        acc = tap if acc is None else acc + tap
    acc = acc + bdw_ref[...]
    # Zero output rows past the real sequence so the stats and pass 2 stay exact.
    oidx = t * Tt + jax.lax.broadcasted_iota(jnp.int32, (Tt, 1), 0)
    acc = jnp.where(oidx < t_actual, acc, 0.0)

    dw_ref[...] = acc[None]                                   # (1, Tt, Cp)

    # Partial GroupNorm sums for this tile (aligned (8, 128) slab output).
    s1 = jnp.sum(acc)
    s2 = jnp.sum(acc * acc)
    stats_ref[...] = jnp.concatenate(
        [jnp.full((4, 128), s1, jnp.float32),
         jnp.full((4, 128), s2, jnp.float32)], axis=0)[None, None]


def _pass2_kernel(dw_ref, scale_ref, shift_ref, w2_ref, b2_ref, o_ref):
    acc = dw_ref[0]                               # (Tt, Cp) f32
    y = acc * scale_ref[0] + shift_ref[0]         # GroupNorm affine (per sample)
    s = y * jax.nn.sigmoid(y)                     # SiLU
    out = jnp.dot(s.astype(w2_ref.dtype), w2_ref[...],
                  preferred_element_type=jnp.float32) + b2_ref[...]
    o_ref[...] = out[None].astype(o_ref.dtype)


def _choose_t_block(T, K, mxu_m, bytes_fn, budget, t_block):
    pad = (K - 1) // 2
    H = _round_up(pad, 8) if pad > 0 else 0
    lo = max(8, H)
    if t_block is not None:
        return _round_up(max(t_block, lo), 8), H
    tt = _round_up(min(max(T, lo), max(mxu_m, lo)), 8)
    while tt > lo and bytes_fn(tt, H) > budget:
        new_tt = max(lo, _round_up(tt // 2, 8))
        if new_tt == tt:
            break
        tt = new_tt
    return tt, H


def _two_pass_forward(x, prep, t_block, mxu_m, budget, vmem_limit, eps):
    B, T, V = x.shape
    (w1a, w1g, b1a, b1g, wdw, bdw, gamma, beta, w2, b2) = prep["weights"]
    K, C, Vp, Cp = prep["K"], prep["C"], prep["Vp"], prep["Cp"]
    mxd = prep["matmul_dtype"]

    w_bytes1 = sum(a.size * a.dtype.itemsize for a in (w1a, w1g, b1a, b1g, wdw, bdw))

    def p1_bytes(tt, hh):
        me = tt + 2 * hh
        return (3 * 2 * tt * Vp * 4 + 2 * tt * Cp * 4
                + me * (8 * Cp + 2 * Vp) * 4 + int(w_bytes1))

    Tt, H = _choose_t_block(T, K, mxu_m, p1_bytes, budget, t_block)
    T2 = _round_up(max(T, Tt), Tt)
    nT = T2 // Tt

    need_pad = (Vp != V) or (T2 != T)
    if need_pad:
        x_in = jnp.pad(x, ((0, 0), (0, T2 - T), (0, Vp - V))).astype(mxd)
    else:
        x_in = x

    # ---- pass 1: pw1 + GLU + depthwise + partial GroupNorm sums ------------ #
    p1 = functools.partial(_pass1_kernel, t_actual=T, t_block=Tt, halo=H)
    dw, stats = pl.pallas_call(
        p1,
        out_shape=(jax.ShapeDtypeStruct((B, T2, Cp), jnp.float32),
                   jax.ShapeDtypeStruct((B, nT, 8, 128), jnp.float32)),
        grid_spec=pltpu.PrefetchScalarGridSpec(
            num_scalar_prefetch=0,
            grid=(B, nT),
            in_specs=[
                pl.BlockSpec((1, Tt, Vp), lambda b, t: (b, jnp.maximum(t - 1, 0), 0)),
                pl.BlockSpec((1, Tt, Vp), lambda b, t: (b, t, 0)),
                pl.BlockSpec((1, Tt, Vp), lambda b, t: (b, jnp.minimum(t + 1, nT - 1), 0)),
                _const_spec(w1a), _const_spec(w1g), _const_spec(b1a),
                _const_spec(b1g), _const_spec(wdw), _const_spec(bdw)],
            out_specs=[pl.BlockSpec((1, Tt, Cp), lambda b, t: (b, t, 0)),
                       pl.BlockSpec((1, 1, 8, 128), lambda b, t: (b, t, 0, 0))]),
        compiler_params=pltpu.CompilerParams(
            dimension_semantics=("parallel", "parallel"),
            vmem_limit_bytes=vmem_limit),
    )(x_in, x_in, x_in, w1a, w1g, b1a, b1g, wdw, bdw)

    # ---- finish the GroupNorm statistics (tiny, plain XLA) ----------------- #
    n = float(T * C)
    s1 = jnp.sum(stats[:, :, 0, 0], axis=1)
    s2 = jnp.sum(stats[:, :, 4, 0], axis=1)
    mean = s1 / n
    inv = jax.lax.rsqrt(s2 / n - mean * mean + eps)
    scale = inv[:, None] * gamma[0][None, :]                  # (B, Cp)
    shift = beta[0][None, :] - mean[:, None] * scale          # (B, Cp)
    scale = scale[:, None, :].astype(jnp.float32)             # (B, 1, Cp)
    shift = shift[:, None, :].astype(jnp.float32)

    # ---- pass 2: normalize + SiLU + pw2 ------------------------------------ #
    out = pl.pallas_call(
        _pass2_kernel,
        out_shape=jax.ShapeDtypeStruct((B, T2, Vp), x.dtype),
        grid_spec=pltpu.PrefetchScalarGridSpec(
            num_scalar_prefetch=0,
            grid=(B, nT),
            in_specs=[pl.BlockSpec((1, Tt, Cp), lambda b, t: (b, t, 0)),
                      pl.BlockSpec((1, 1, Cp), lambda b, t: (b, 0, 0)),
                      pl.BlockSpec((1, 1, Cp), lambda b, t: (b, 0, 0)),
                      _const_spec(w2), _const_spec(b2)],
            out_specs=pl.BlockSpec((1, Tt, Vp), lambda b, t: (b, t, 0))),
        compiler_params=pltpu.CompilerParams(
            dimension_semantics=("parallel", "parallel"),
            vmem_limit_bytes=vmem_limit),
    )(dw, scale, shift, w2, b2)

    if need_pad:
        out = out[:, :T, :V]
    return out


# --------------------------------------------------------------------------- #
# Public wrapper
# --------------------------------------------------------------------------- #
def convolution_module(x, params, *, mode=None, rows_per_block=None, t_block=None,
                       matmul_dtype=jnp.bfloat16, eps=1e-5):
    """x: (B, T, V) float32, channels-last. Returns (B, T, V)."""
    assert mode in (None, "fused", "two_pass")
    B, T, V = x.shape
    prep = _prepare_params(params, matmul_dtype)
    Vp, Cp = prep["Vp"], prep["Cp"]

    vmem_bytes, mxu_m = _hw_defaults()
    budget = vmem_bytes * 3 // 4          # ~48 MiB on v7x, ~96 MiB on v5e/v6e
    vmem_limit = int(budget)

    Tp = _round_up(T, 8)
    w_bytes = sum(a.size * a.dtype.itemsize for a in prep["weights"])
    fused_bytes = lambda bt: _fused_block_bytes(bt, Tp, Vp, Cp, w_bytes)

    if rows_per_block is None:
        bt = _choose_rows_per_block(B, Tp, mxu_m, fused_bytes, budget)
    else:
        bt = rows_per_block
    assert B % bt == 0, "rows_per_block must divide batch"

    if mode is None:
        if fused_bytes(1) > budget:
            mode = "two_pass"             # fused block would not fit VMEM
        elif B == 1 and Tp >= 2 * max(128, mxu_m):
            mode = "two_pass"             # keep both v7x TCs busy via T tiles
        else:
            mode = "fused"

    if mode == "fused":
        return _fused_forward(x, prep, bt, Tp, vmem_limit, eps)
    return _two_pass_forward(x, prep, t_block, mxu_m, budget, vmem_limit, eps)


# --------------------------------------------------------------------------- #
# Pure-JAX reference (same math: bf16 matmul operands, f32 elsewhere)
# --------------------------------------------------------------------------- #
def reference(x, params, matmul_dtype=jnp.bfloat16, eps=1e-5):
    w1_t, b1 = params["w1_t"], params["b1"]
    wdw_t, bdw = params["wdw_t"], params["bdw"]
    gamma, beta = params["gamma"], params["beta"]
    w2_t, b2 = params["w2_t"], params["b2"]
    K, C = wdw_t.shape
    pad = (K - 1) // 2

    h = jnp.einsum("btv,vc->btc", x.astype(matmul_dtype), w1_t.astype(matmul_dtype),
                   preferred_element_type=jnp.float32) + b1
    a, g = h[..., :C], h[..., C:]
    u = a * jax.nn.sigmoid(g)

    up = jnp.pad(u, ((0, 0), (pad, pad), (0, 0)))
    acc = jnp.zeros_like(u)
    for k in range(K):
        acc = acc + up[:, k:k + u.shape[1], :] * wdw_t[k][None, None, :]
    acc = acc + bdw

    mean = jnp.mean(acc, axis=(1, 2), keepdims=True)
    var = jnp.mean((acc - mean) ** 2, axis=(1, 2), keepdims=True)
    y = (acc - mean) * jax.lax.rsqrt(var + eps) * gamma + beta
    s = y * jax.nn.sigmoid(y)
    return jnp.einsum("btc,cv->btv", s.astype(matmul_dtype), w2_t.astype(matmul_dtype),
                      preferred_element_type=jnp.float32) + b2


if __name__ == "__main__":
    # Small shapes: batch=2, seq=16, vocab_size=32, num_channels=16, K=3.
    B, T, V, C, K = 2, 16, 32, 16, 3

    key = jax.random.PRNGKey(0)
    ks = jax.random.split(key, 9)
    scale = 0.1
    params = {
        "w1_t": scale * jax.random.normal(ks[0], (V, 2 * C), jnp.float32),
        "b1":   scale * jax.random.normal(ks[1], (1, 2 * C), jnp.float32),
        "wdw_t": scale * jax.random.normal(ks[2], (K, C), jnp.float32),
        "bdw":  scale * jax.random.normal(ks[3], (1, C), jnp.float32),
        "gamma": 1.0 + scale * jax.random.normal(ks[4], (1, C), jnp.float32),
        "beta": scale * jax.random.normal(ks[5], (1, C), jnp.float32),
        "w2_t": scale * jax.random.normal(ks[6], (C, V), jnp.float32),
        "b2":   scale * jax.random.normal(ks[7], (1, V), jnp.float32),
    }
    x = jax.random.normal(ks[8], (B, T, V), jnp.float32)
    ref = reference(x, params)

    # 1) auto plan (fused, Bt=1 -> 2 parallel grid steps)
    out = jax.block_until_ready(convolution_module(x, params))
    assert out.shape == (B, T, V)
    assert jnp.allclose(out, ref, rtol=1e-3, atol=1e-3), "mismatch (auto/fused)"

    # 2) fused with both samples folded into one MXU call (M = 2*T)
    out2 = jax.block_until_ready(convolution_module(x, params, rows_per_block=2))
    assert jnp.allclose(out2, ref, rtol=1e-3, atol=1e-3), "mismatch (fused rows=2)"

    # 3) forced T-tiled two-pass path (grid (B, nT) = (2, 2), both parallel)
    out3 = jax.block_until_ready(
        convolution_module(x, params, mode="two_pass", t_block=8))
    assert jnp.allclose(out3, ref, rtol=1e-3, atol=1e-3), "mismatch (two_pass)"

    # 4) T not a multiple of 8 / of the tile size: exercises padding + masks
    x_odd = jax.random.normal(jax.random.PRNGKey(1), (B, 12, V), jnp.float32)
    ref_odd = reference(x_odd, params)
    out4 = jax.block_until_ready(convolution_module(x_odd, params))
    assert jnp.allclose(out4, ref_odd, rtol=1e-3, atol=1e-3), "mismatch (fused, T=12)"
    out5 = jax.block_until_ready(
        convolution_module(x_odd, params, mode="two_pass", t_block=8))
    assert jnp.allclose(out5, ref_odd, rtol=1e-3, atol=1e-3), "mismatch (two_pass, T=12)"

    print("KERNEL_OK")
</pallas_src>

<mosaic_0001>
module attributes {stable_mosaic.version = 11 : i64} {
  func.func @_fused_kernel(%arg0: i32, %arg1: memref<1x16x128xbf16, #tpu.memory_space<vmem>>, %arg2: memref<128x128xbf16, #tpu.memory_space<vmem>>, %arg3: memref<128x128xbf16, #tpu.memory_space<vmem>>, %arg4: memref<1x128xf32, #tpu.memory_space<vmem>>, %arg5: memref<1x128xf32, #tpu.memory_space<vmem>>, %arg6: memref<3x128xf32, #tpu.memory_space<vmem>>, %arg7: memref<1x128xf32, #tpu.memory_space<vmem>>, %arg8: memref<1x128xf32, #tpu.memory_space<vmem>>, %arg9: memref<1x128xf32, #tpu.memory_space<vmem>>, %arg10: memref<128x128xbf16, #tpu.memory_space<vmem>>, %arg11: memref<1x128xf32, #tpu.memory_space<vmem>>, %arg12: memref<1x16x128xf32, #tpu.memory_space<vmem>>) attributes {dimension_semantics = [#tpu.dimension_semantics<parallel>], iteration_bounds = array<i64: 2>, scalar_prefetch = 0 : i64, scratch_operands = 0 : i64, tpu.core_type = #tpu.core_type<tc>, window_params = [{transform_indices = @transform_0, window_bounds = array<i64: 1, 16, 128>}, {pipeline_mode = #tpu.pipeline_mode<synchronous>, transform_indices = @transform_1, window_bounds = array<i64: 128, 128>}, {pipeline_mode = #tpu.pipeline_mode<synchronous>, transform_indices = @transform_2, window_bounds = array<i64: 128, 128>}, {pipeline_mode = #tpu.pipeline_mode<synchronous>, transform_indices = @transform_3, window_bounds = array<i64: 1, 128>}, {pipeline_mode = #tpu.pipeline_mode<synchronous>, transform_indices = @transform_4, window_bounds = array<i64: 1, 128>}, {pipeline_mode = #tpu.pipeline_mode<synchronous>, transform_indices = @transform_5, window_bounds = array<i64: 3, 128>}, {pipeline_mode = #tpu.pipeline_mode<synchronous>, transform_indices = @transform_6, window_bounds = array<i64: 1, 128>}, {pipeline_mode = #tpu.pipeline_mode<synchronous>, transform_indices = @transform_7, window_bounds = array<i64: 1, 128>}, {pipeline_mode = #tpu.pipeline_mode<synchronous>, transform_indices = @transform_8, window_bounds = array<i64: 1, 128>}, {pipeline_mode = #tpu.pipeline_mode<synchronous>, transform_indices = @transform_9, window_bounds = array<i64: 128, 128>}, {pipeline_mode = #tpu.pipeline_mode<synchronous>, transform_indices = @transform_10, window_bounds = array<i64: 1, 128>}, {transform_indices = @transform_11, window_bounds = array<i64: 1, 16, 128>}]} {
    %c0 = arith.constant 0 : index
    %c0_0 = arith.constant 0 : index
    %c0_1 = arith.constant 0 : index
    %0 = vector.load %arg1[%c0, %c0_0, %c0_1] : memref<1x16x128xbf16, #tpu.memory_space<vmem>>, vector<1x16x128xbf16>
    %1 = vector.shape_cast %0 : vector<1x16x128xbf16> to vector<16x128xbf16>
    %c0_2 = arith.constant 0 : index
    %c0_3 = arith.constant 0 : index
    %2 = vector.load %arg2[%c0_2, %c0_3] : memref<128x128xbf16, #tpu.memory_space<vmem>>, vector<128x128xbf16>
    %cst = arith.constant dense<0.000000e+00> : vector<16x128xf32>
    %3 = tpu.matmul %1, %2, %cst {dimension_numbers = #tpu.dot_dimension_numbers<[1], [0], [0], [1], [0, 0, 1, 1], [], []>} : vector<16x128xbf16>, vector<128x128xbf16>, vector<16x128xf32> -> vector<16x128xf32>
    %c0_4 = arith.constant 0 : index
    %c0_5 = arith.constant 0 : index
    %4 = vector.load %arg4[%c0_4, %c0_5] : memref<1x128xf32, #tpu.memory_space<vmem>>, vector<1x128xf32>
    %5 = vector.broadcast %4 : vector<1x128xf32> to vector<16x128xf32>
    %6 = arith.addf %3, %5 : vector<16x128xf32>
    %c0_6 = arith.constant 0 : index
    %c0_7 = arith.constant 0 : index
    %7 = vector.load %arg3[%c0_6, %c0_7] : memref<128x128xbf16, #tpu.memory_space<vmem>>, vector<128x128xbf16>
    %cst_8 = arith.constant dense<0.000000e+00> : vector<16x128xf32>
    %8 = tpu.matmul %1, %7, %cst_8 {dimension_numbers = #tpu.dot_dimension_numbers<[1], [0], [0], [1], [0, 0, 1, 1], [], []>} : vector<16x128xbf16>, vector<128x128xbf16>, vector<16x128xf32> -> vector<16x128xf32>
    %c0_9 = arith.constant 0 : index
    %c0_10 = arith.constant 0 : index
    %9 = vector.load %arg5[%c0_9, %c0_10] : memref<1x128xf32, #tpu.memory_space<vmem>>, vector<1x128xf32>
    %10 = vector.broadcast %9 : vector<1x128xf32> to vector<16x128xf32>
    %11 = arith.addf %8, %10 : vector<16x128xf32>
    %12 = arith.negf %11 : vector<16x128xf32>
    %13 = math.exp %12 : vector<16x128xf32>
    %cst_11 = arith.constant 1.000000e+00 : f32
    %14 = vector.broadcast %cst_11 : f32 to vector<16x128xf32>
    %15 = arith.addf %14, %13 : vector<16x128xf32>
    %16 = arith.divf %14, %15 : vector<16x128xf32>
    %17 = arith.mulf %6, %16 : vector<16x128xf32>
    %18 = tpu.iota {dimensions = array<i32: 0>} : vector<16x1xi32>
    %c16_i32 = arith.constant 16 : i32
    %c0_i32 = arith.constant 0 : i32
    %19 = arith.cmpi eq, %c16_i32, %c0_i32 : i32
    %c1_i32 = arith.constant 1 : i32
    %20 = arith.select %19, %c1_i32, %c16_i32 : i32
    %21 = vector.broadcast %20 : i32 to vector<16x1xi32>
    %22 = arith.remsi %18, %21 : vector<16x1xi32>
    %c0_i32_12 = arith.constant 0 : i32
    %23 = vector.broadcast %c0_i32_12 : i32 to vector<16x1xi32>
    %24 = arith.cmpi ne, %22, %23 : vector<16x1xi32>
    %c0_i32_13 = arith.constant 0 : i32
    %25 = vector.broadcast %c0_i32_13 : i32 to vector<16x1xi32>
    %26 = arith.cmpi slt, %22, %25 : vector<16x1xi32>
    %c0_i32_14 = arith.constant 0 : i32
    %27 = arith.cmpi slt, %20, %c0_i32_14 : i32
    %28 = vector.broadcast %27 : i1 to vector<16x1xi1>
    %29 = vector.broadcast %28 : vector<16x1xi1> to vector<16x1xi1>
    %30 = arith.xori %26, %29 : vector<16x1xi1>
    %31 = arith.andi %30, %24 : vector<16x1xi1>
    %32 = vector.broadcast %20 : i32 to vector<16x1xi32>
    %33 = arith.addi %22, %32 : vector<16x1xi32>
    %34 = arith.select %31, %33, %22 : vector<16x1xi1>, vector<16x1xi32>
    %c0_15 = arith.constant 0 : index
    %c0_16 = arith.constant 0 : index
    %35 = vector.load %arg6[%c0_15, %c0_16] : memref<3x128xf32, #tpu.memory_space<vmem>>, vector<1x128xf32>
    %c1_i32_17 = arith.constant 1 : i32
    %36 = tpu.dynamic_rotate %17 by %c1_i32_17 dim 0 : vector<16x128xf32>, i32 -> vector<16x128xf32>
    %c1_i32_18 = arith.constant 1 : i32
    %37 = vector.broadcast %c1_i32_18 : i32 to vector<16x1xi32>
    %38 = arith.cmpi sge, %34, %37 : vector<16x1xi32>
    %cst_19 = arith.constant 0.000000e+00 : f32
    %39 = vector.shape_cast %38 : vector<16x1xi1> to vector<16x1xi1>
    %40 = vector.broadcast %39 : vector<16x1xi1> to vector<16x128xi1>
    %41 = vector.broadcast %cst_19 : f32 to vector<16x128xf32>
    %42 = arith.select %40, %36, %41 : vector<16x128xi1>, vector<16x128xf32>
    %43 = vector.broadcast %35 : vector<1x128xf32> to vector<16x128xf32>
    %44 = arith.mulf %42, %43 : vector<16x128xf32>
    %c1 = arith.constant 1 : index
    %c0_20 = arith.constant 0 : index
    %45 = vector.load %arg6[%c1, %c0_20] : memref<3x128xf32, #tpu.memory_space<vmem>>, vector<1x128xf32>
    %46 = vector.broadcast %45 : vector<1x128xf32> to vector<16x128xf32>
    %47 = arith.mulf %17, %46 : vector<16x128xf32>
    %48 = arith.addf %44, %47 : vector<16x128xf32>
    %c2 = arith.constant 2 : index
    %c0_21 = arith.constant 0 : index
    %49 = vector.load %arg6[%c2, %c0_21] : memref<3x128xf32, #tpu.memory_space<vmem>>, vector<1x128xf32>
    %c15_i32 = arith.constant 15 : i32
    %50 = tpu.dynamic_rotate %17 by %c15_i32 dim 0 : vector<16x128xf32>, i32 -> vector<16x128xf32>
    %c15_i32_22 = arith.constant 15 : i32
    %51 = vector.broadcast %c15_i32_22 : i32 to vector<16x1xi32>
    %52 = arith.cmpi slt, %34, %51 : vector<16x1xi32>
    %cst_23 = arith.constant 0.000000e+00 : f32
    %53 = vector.shape_cast %52 : vector<16x1xi1> to vector<16x1xi1>
    %54 = vector.broadcast %53 : vector<16x1xi1> to vector<16x128xi1>
    %55 = vector.broadcast %cst_23 : f32 to vector<16x128xf32>
    %56 = arith.select %54, %50, %55 : vector<16x128xi1>, vector<16x128xf32>
    %57 = vector.broadcast %49 : vector<1x128xf32> to vector<16x128xf32>
    %58 = arith.mulf %56, %57 : vector<16x128xf32>
    %59 = arith.addf %48, %58 : vector<16x128xf32>
    %c0_24 = arith.constant 0 : index
    %c0_25 = arith.constant 0 : index
    %60 = vector.load %arg7[%c0_24, %c0_25] : memref<1x128xf32, #tpu.memory_space<vmem>>, vector<1x128xf32>
    %61 = vector.broadcast %60 : vector<1x128xf32> to vector<16x128xf32>
    %62 = arith.addf %59, %61 : vector<16x128xf32>
    %cst_26 = arith.constant dense<0.000000e+00> : vector<16xf32>
    %63 = vector.multi_reduction <add>, %62, %cst_26 [1] : vector<16x128xf32> to vector<16xf32>
    %64 = vector.shape_cast %63 : vector<16xf32> to vector<16x1xf32>
    %65 = arith.mulf %62, %62 : vector<16x128xf32>
    %cst_27 = arith.constant dense<0.000000e+00> : vector<16xf32>
    %66 = vector.multi_reduction <add>, %65, %cst_27 [1] : vector<16x128xf32> to vector<16xf32>
    %67 = vector.shape_cast %66 : vector<16xf32> to vector<16x1xf32>
    %68 = vector.shape_cast %64 : vector<16x1xf32> to vector<1x16x1xf32>
    %cst_28 = arith.constant dense<0.000000e+00> : vector<1x1xf32>
    %69 = vector.multi_reduction <add>, %68, %cst_28 [1] : vector<1x16x1xf32> to vector<1x1xf32>
    %70 = vector.shape_cast %69 : vector<1x1xf32> to vector<1x1x1xf32>
    %71 = vector.shape_cast %67 : vector<16x1xf32> to vector<1x16x1xf32>
    %cst_29 = arith.constant dense<0.000000e+00> : vector<1x1xf32>
    %72 = vector.multi_reduction <add>, %71, %cst_29 [1] : vector<1x16x1xf32> to vector<1x1xf32>
    %73 = vector.shape_cast %72 : vector<1x1xf32> to vector<1x1x1xf32>
    %cst_30 = arith.constant 2.560000e+02 : f32
    %74 = vector.broadcast %cst_30 : f32 to vector<1x1x1xf32>
    %75 = arith.divf %70, %74 : vector<1x1x1xf32>
    %cst_31 = arith.constant 2.560000e+02 : f32
    %76 = vector.broadcast %cst_31 : f32 to vector<1x1x1xf32>
    %77 = arith.divf %73, %76 : vector<1x1x1xf32>
    %78 = arith.mulf %75, %75 : vector<1x1x1xf32>
    %79 = arith.subf %77, %78 : vector<1x1x1xf32>
    %cst_32 = arith.constant 9.99999974E-6 : f32
    %80 = vector.broadcast %cst_32 : f32 to vector<1x1x1xf32>
    %81 = arith.addf %79, %80 : vector<1x1x1xf32>
    %82 = math.rsqrt %81 : vector<1x1x1xf32>
    %83 = vector.shape_cast %75 : vector<1x1x1xf32> to vector<1x1x1xf32>
    %84 = vector.broadcast %83 : vector<1x1x1xf32> to vector<1x16x1xf32>
    %85 = vector.shape_cast %84 : vector<1x16x1xf32> to vector<16x1xf32>
    %86 = vector.shape_cast %82 : vector<1x1x1xf32> to vector<1x1x1xf32>
    %87 = vector.broadcast %86 : vector<1x1x1xf32> to vector<1x16x1xf32>
    %88 = vector.shape_cast %87 : vector<1x16x1xf32> to vector<16x1xf32>
    %89 = vector.broadcast %85 : vector<16x1xf32> to vector<16x128xf32>
    %90 = arith.subf %62, %89 : vector<16x128xf32>
    %91 = vector.broadcast %88 : vector<16x1xf32> to vector<16x128xf32>
    %92 = arith.mulf %90, %91 : vector<16x128xf32>
    %c0_33 = arith.constant 0 : index
    %c0_34 = arith.constant 0 : index
    %93 = vector.load %arg8[%c0_33, %c0_34] : memref<1x128xf32, #tpu.memory_space<vmem>>, vector<1x128xf32>
    %94 = vector.broadcast %93 : vector<1x128xf32> to vector<16x128xf32>
    %95 = arith.mulf %92, %94 : vector<16x128xf32>
    %c0_35 = arith.constant 0 : index
    %c0_36 = arith.constant 0 : index
    %96 = vector.load %arg9[%c0_35, %c0_36] : memref<1x128xf32, #tpu.memory_space<vmem>>, vector<1x128xf32>
    %97 = vector.broadcast %96 : vector<1x128xf32> to vector<16x128xf32>
    %98 = arith.addf %95, %97 : vector<16x128xf32>
    %99 = arith.negf %98 : vector<16x128xf32>
    %100 = math.exp %99 : vector<16x128xf32>
    %cst_37 = arith.constant 1.000000e+00 : f32
    %101 = vector.broadcast %cst_37 : f32 to vector<16x128xf32>
    %102 = arith.addf %101, %100 : vector<16x128xf32>
    %103 = arith.divf %101, %102 : vector<16x128xf32>
    %104 = arith.mulf %98, %103 : vector<16x128xf32>
    %105 = arith.truncf %104 : vector<16x128xf32> to vector<16x128xbf16>
    %c0_38 = arith.constant 0 : index
    %c0_39 = arith.constant 0 : index
    %106 = vector.load %arg10[%c0_38, %c0_39] : memref<128x128xbf16, #tpu.memory_space<vmem>>, vector<128x128xbf16>
    %cst_40 = arith.constant dense<0.000000e+00> : vector<16x128xf32>
    %107 = tpu.matmul %105, %106, %cst_40 {dimension_numbers = #tpu.dot_dimension_numbers<[1], [0], [0], [1], [0, 0, 1, 1], [], []>} : vector<16x128xbf16>, vector<128x128xbf16>, vector<16x128xf32> -> vector<16x128xf32>
    %c0_41 = arith.constant 0 : index
    %c0_42 = arith.constant 0 : index
    %108 = vector.load %arg11[%c0_41, %c0_42] : memref<1x128xf32, #tpu.memory_space<vmem>>, vector<1x128xf32>
    %109 = vector.broadcast %108 : vector<1x128xf32> to vector<16x128xf32>
    %110 = arith.addf %107, %109 : vector<16x128xf32>
    %111 = vector.shape_cast %110 : vector<16x128xf32> to vector<1x16x128xf32>
    %c0_43 = arith.constant 0 : index
    %c0_44 = arith.constant 0 : index
    %c0_45 = arith.constant 0 : index
    %112 = vector.load %arg12[%c0_43, %c0_44, %c0_45] : memref<1x16x128xf32, #tpu.memory_space<vmem>>, vector<1x16x128xf32>
    tpu.vector_store %arg12[%c0_43, %c0_44, %c0_45], %111 {strides = array<i32>} : memref<1x16x128xf32, #tpu.memory_space<vmem>>, vector<1x16x128xf32>,
    return
  }
  func.func @transform_0(%arg0: i32) -> (i32, i32, i32) {
    %c0_i32 = arith.constant 0 : i32
    %c0_i32_0 = arith.constant 0 : i32
    %c0_i32_1 = arith.constant 0 : i32
    return %arg0, %c0_i32, %c0_i32_0 : i32, i32, i32
  }
  func.func @transform_1(%arg0: i32) -> (i32, i32) {
    %c0_i32 = arith.constant 0 : i32
    %c0_i32_0 = arith.constant 0 : i32
    %c0_i32_1 = arith.constant 0 : i32
    return %c0_i32, %c0_i32_0 : i32, i32
  }
  func.func @transform_2(%arg0: i32) -> (i32, i32) {
    %c0_i32 = arith.constant 0 : i32
    %c0_i32_0 = arith.constant 0 : i32
    %c0_i32_1 = arith.constant 0 : i32
    return %c0_i32, %c0_i32_0 : i32, i32
  }
  func.func @transform_3(%arg0: i32) -> (i32, i32) {
    %c0_i32 = arith.constant 0 : i32
    %c0_i32_0 = arith.constant 0 : i32
    %c0_i32_1 = arith.constant 0 : i32
    return %c0_i32, %c0_i32_0 : i32, i32
  }
  func.func @transform_4(%arg0: i32) -> (i32, i32) {
    %c0_i32 = arith.constant 0 : i32
    %c0_i32_0 = arith.constant 0 : i32
    %c0_i32_1 = arith.constant 0 : i32
    return %c0_i32, %c0_i32_0 : i32, i32
  }
  func.func @transform_5(%arg0: i32) -> (i32, i32) {
    %c0_i32 = arith.constant 0 : i32
    %c0_i32_0 = arith.constant 0 : i32
    %c0_i32_1 = arith.constant 0 : i32
    return %c0_i32, %c0_i32_0 : i32, i32
  }
  func.func @transform_6(%arg0: i32) -> (i32, i32) {
    %c0_i32 = arith.constant 0 : i32
    %c0_i32_0 = arith.constant 0 : i32
    %c0_i32_1 = arith.constant 0 : i32
    return %c0_i32, %c0_i32_0 : i32, i32
  }
  func.func @transform_7(%arg0: i32) -> (i32, i32) {
    %c0_i32 = arith.constant 0 : i32
    %c0_i32_0 = arith.constant 0 : i32
    %c0_i32_1 = arith.constant 0 : i32
    return %c0_i32, %c0_i32_0 : i32, i32
  }
  func.func @transform_8(%arg0: i32) -> (i32, i32) {
    %c0_i32 = arith.constant 0 : i32
    %c0_i32_0 = arith.constant 0 : i32
    %c0_i32_1 = arith.constant 0 : i32
    return %c0_i32, %c0_i32_0 : i32, i32
  }
  func.func @transform_9(%arg0: i32) -> (i32, i32) {
    %c0_i32 = arith.constant 0 : i32
    %c0_i32_0 = arith.constant 0 : i32
    %c0_i32_1 = arith.constant 0 : i32
    return %c0_i32, %c0_i32_0 : i32, i32
  }
  func.func @transform_10(%arg0: i32) -> (i32, i32) {
    %c0_i32 = arith.constant 0 : i32
    %c0_i32_0 = arith.constant 0 : i32
    %c0_i32_1 = arith.constant 0 : i32
    return %c0_i32, %c0_i32_0 : i32, i32
  }
  func.func @transform_11(%arg0: i32) -> (i32, i32, i32) {
    %c0_i32 = arith.constant 0 : i32
    %c0_i32_0 = arith.constant 0 : i32
    %c0_i32_1 = arith.constant 0 : i32
    return %arg0, %c0_i32, %c0_i32_0 : i32, i32, i32
  }
}

</mosaic_0001>

<llo_original>
// kernel: tpu_custom_call.1
$region0: #{tpu_custom_call.1}
  #allocation0 [shape = 'u32[]', space=smem, size = 0x4, offset = 0x4, fixed_abs, tag = 'smem constant byte address 0x4 - core index']
  #allocation1 [shape = 'u32[144,128]{1,0:T(1,128)}', space=vmem, size = 0x12000, scoped, tag = 'internal scratch']
  %s0 = inlined_call_operand.hbm [shape: bf16[2,16,128], index: 0, kind: input, shape index: {}]
  %s1 = inlined_call_operand.hbm [shape: bf16[128,128], index: 1, kind: input, shape index: {}]
  %s2 = inlined_call_operand.hbm [shape: bf16[128,128], index: 2, kind: input, shape index: {}]
  %s3 = inlined_call_operand.hbm [shape: f32[1,128], index: 3, kind: input, shape index: {}]
  %s4 = inlined_call_operand.hbm [shape: f32[1,128], index: 4, kind: input, shape index: {}]
  %s5 = inlined_call_operand.hbm [shape: f32[3,128], index: 5, kind: input, shape index: {}]
  %s6 = inlined_call_operand.hbm [shape: f32[1,128], index: 6, kind: input, shape index: {}]
  %s7 = inlined_call_operand.hbm [shape: f32[1,128], index: 7, kind: input, shape index: {}]
  %s8 = inlined_call_operand.hbm [shape: f32[1,128], index: 8, kind: input, shape index: {}]
  %s9 = inlined_call_operand.hbm [shape: bf16[128,128], index: 9, kind: input, shape index: {}]
  %s10 = inlined_call_operand.hbm [shape: f32[1,128], index: 10, kind: input, shape index: {}]
  %s11 = inlined_call_operand.hbm [shape: f32[2,16,128], index: 11, kind: output, shape index: {}]
  %s12 = sld [smem:[#allocation0]]
  $region121: #{tpu_custom_call.1} parent=0
    _
  %s14 = ssub.s32 1, %s12
  %s15 = scalar_select 0, %s14, %s12
  $region1: #{tpu_custom_call.1} parent=0
    #allocation2 [shape = 'u8[8192]{0}', space=vmem, size = 0x2000, scoped, tag = 'input window, operand 0']
    #allocation3 [shape = 's32[2]{0}', space=sflag, size = 0x8, scoped, tag = 'scoped memory for tpu_custom_call.1']
    #allocation4 [shape = 's32[2]{0}', space=sflag, size = 0x8, scoped, tag = 'scoped memory for tpu_custom_call.1']
    #allocation5 [shape = 'u8[32768]{0}', space=vmem, size = 0x8000, scoped, tag = 'input window, operand 1, single buffered']
    #allocation6 [shape = 's32[1]{0}', space=sflag, size = 0x4, scoped, tag = 'scoped memory for tpu_custom_call.1']
    #allocation7 [shape = 'u8[32768]{0}', space=vmem, size = 0x8000, scoped, tag = 'input window, operand 2, single buffered']
    #allocation8 [shape = 'u8[512]{0}', space=vmem, size = 0x400, scoped, tag = 'input window, operand 3, single buffered']
    #allocation9 [shape = 's32[1]{0}', space=sflag, size = 0x4, scoped, tag = 'scoped memory for tpu_custom_call.1']
    #allocation10 [shape = 'u8[512]{0}', space=vmem, size = 0x400, scoped, tag = 'input window, operand 4, single buffered']
    #allocation11 [shape = 'u8[2048]{0}', space=vmem, size = 0x800, scoped, tag = 'input window, operand 5, single buffered']
    #allocation12 [shape = 's32[1]{0}', space=sflag, size = 0x4, scoped, tag = 'scoped memory for tpu_custom_call.1']
    #allocation13 [shape = 'u8[512]{0}', space=vmem, size = 0x400, scoped, tag = 'input window, operand 6, single buffered']
    #allocation14 [shape = 'u8[512]{0}', space=vmem, size = 0x400, scoped, tag = 'input window, operand 7, single buffered']
    #allocation15 [shape = 's32[1]{0}', space=sflag, size = 0x4, scoped, tag = 'scoped memory for tpu_custom_call.1']
    #allocation16 [shape = 'u8[512]{0}', space=vmem, size = 0x400, scoped, tag = 'input window, operand 8, single buffered']
    #allocation17 [shape = 'u8[32768]{0}', space=vmem, size = 0x8000, scoped, tag = 'input window, operand 9, single buffered']
    #allocation18 [shape = 's32[1]{0}', space=sflag, size = 0x4, scoped, tag = 'scoped memory for tpu_custom_call.1']
    #allocation19 [shape = 'u8[512]{0}', space=vmem, size = 0x400, scoped, tag = 'input window, operand 10, single buffered']
    #allocation20 [shape = 'u8[16384]{0}', space=vmem, size = 0x4000, scoped, tag = 'output window, operand 0']
    %16 = vsyncpa [#allocation3], 0
    %s17 = scalar_lea.sflag [#allocation3], 1
    %18 = vsyncpa %s17, 0
    %19 = vsyncpa [#allocation6], 0
    %20 = vsyncpa [#allocation9], 0
    %21 = vsyncpa [#allocation12], 0
    %22 = vsyncpa [#allocation15], 0
    %23 = vsyncpa [#allocation18], 0
    %24 = vsyncpa [#allocation4], 0
    %s25 = scalar_lea.sflag [#allocation4], 1
    %26 = vsyncpa %s25, 0
    loop: start=0, step=1, limit=4
    $region2: #{tpu_custom_call.1} parent=1 // loop_pre_header
      _
    $region3: #{tpu_custom_call.1} parent=1 // loop_header
      %s28 = sphi 0, %s32
      %p29 = scmp.ge.s32.totalorder %s28, 4
      %s38 = sphi 0, %s40
      %s41 = sphi 0, %s38
      %s42 = sphi 0, %s41
      %s58 = sphi 0, %s42
      %s62 = sphi 0, %s62
      %s64 = sphi 0, %s62
      %s65 = sphi 0, %s64
      %s79 = sphi 0, %s65
      %s83 = sphi 0, %s83
      %s85 = sphi 0, %s83
      %s86 = sphi 0, %s85
      %s100 = sphi 0, %s86
      %s104 = sphi 0, %s104
      %s106 = sphi 0, %s104
      %s107 = sphi 0, %s106
      %s121 = sphi 0, %s107
      %s125 = sphi 0, %s125
      %s127 = sphi 0, %s125
      %s128 = sphi 0, %s127
      %s142 = sphi 0, %s128
      %s146 = sphi 0, %s146
      %s148 = sphi 0, %s146
      %s149 = sphi 0, %s148
      %s163 = sphi 0, %s149
      %s167 = sphi 0, %s167
      %s169 = sphi 0, %s167
      %s170 = sphi 0, %s169
      %s184 = sphi 0, %s170
      %s188 = sphi 0, %s188
      %s190 = sphi 0, %s188
      %s191 = sphi 0, %s190
      %s205 = sphi 0, %s191
      %s209 = sphi 0, %s209
      %s211 = sphi 0, %s209
      %s212 = sphi 0, %s211
      %s226 = sphi 0, %s212
      %s230 = sphi 0, %s230
      %s232 = sphi 0, %s230
      %s233 = sphi 0, %s232
      %s247 = sphi 0, %s233
      %s251 = sphi 0, %s251
      %s253 = sphi 0, %s251
      %s254 = sphi 0, %s253
      %s268 = sphi 0, %s254
      %s274 = sphi 0, %s276
      %s277 = sphi 0, %s274
      %s278 = sphi 0, %s277
      %s294 = sphi 0, %s278
    $region4: #{tpu_custom_call.1} parent=1 // loop_header_branch
      %31 = sbr.rel (%p29) target = $region8
    $region5: #{tpu_custom_call.1} parent=1 // loop_body
      %s33 = ssub.s32 %s28, 1
      %s34 = ssub.s32 %s28, 2
      %s35 = sadd.s32 %s28, 1
      %s36 = ssub.s32 %s28, %s35
      %p37 = scmp.eq.s32.totalorder %s36, 0
      %s39 = sadd.s32 %s38, 1
      %s40 = scalar_select %p37, %s38, %s39
      %p43 = pneg %p37
      %p44 = scmp.eq.s32.totalorder %s28, 1
      %p45 = por %p43, %p44
      %p46 = scmp.ne.s32.totalorder %s38, %s41
      %p47 = scmp.eq.s32.totalorder %s28, 0
      %p48 = por %p46, %p47
      %p49 = scmp.ne.s32.totalorder %s38, %s41
      %p50 = scmp.eq.s32.totalorder %s33, 1
      %p51 = por %p49, %p50
      %p52 = scmp.ne.s32.totalorder %s41, %s42
      %p53 = scmp.eq.s32.totalorder %s33, 0
      %p54 = por %p52, %p53
      %p55 = scmp.ne.s32.totalorder %s41, %s42
      %p56 = scmp.eq.s32.totalorder %s34, 1
      %p57 = por %p55, %p56
      %p59 = scmp.ne.s32.totalorder %s42, %s58
      %p60 = scmp.eq.s32.totalorder %s34, 0
      %p61 = por %p59, %p60
      %s63 = sadd.s32 %s62, 1
      %p66 = scmp.eq.s32.totalorder %s28, 1
      %p67 = scmp.ne.s32.totalorder %s62, %s64
      %p68 = scmp.eq.s32.totalorder %s28, 0
      %p69 = por %p67, %p68
      %p70 = scmp.ne.s32.totalorder %s62, %s64
      %p71 = scmp.eq.s32.totalorder %s33, 1
      %p72 = por %p70, %p71
      %p73 = scmp.ne.s32.totalorder %s64, %s65
      %p74 = scmp.eq.s32.totalorder %s33, 0
      %p75 = por %p73, %p74
      %p76 = scmp.ne.s32.totalorder %s64, %s65
      %p77 = scmp.eq.s32.totalorder %s34, 1
      %p78 = por %p76, %p77
      %p80 = scmp.ne.s32.totalorder %s65, %s79
      %p81 = scmp.eq.s32.totalorder %s34, 0
      %p82 = por %p80, %p81
      %s84 = sadd.s32 %s83, 1
      %p87 = scmp.eq.s32.totalorder %s28, 1
      %p88 = scmp.ne.s32.totalorder %s83, %s85
      %p89 = scmp.eq.s32.totalorder %s28, 0
      %p90 = por %p88, %p89
      %p91 = scmp.ne.s32.totalorder %s83, %s85
      %p92 = scmp.eq.s32.totalorder %s33, 1
      %p93 = por %p91, %p92
      %p94 = scmp.ne.s32.totalorder %s85, %s86
      %p95 = scmp.eq.s32.totalorder %s33, 0
      %p96 = por %p94, %p95
      %p97 = scmp.ne.s32.totalorder %s85, %s86
      %p98 = scmp.eq.s32.totalorder %s34, 1
      %p99 = por %p97, %p98
      %p101 = scmp.ne.s32.totalorder %s86, %s100
      %p102 = scmp.eq.s32.totalorder %s34, 0
      %p103 = por %p101, %p102
      %s105 = sadd.s32 %s104, 1
      %p108 = scmp.eq.s32.totalorder %s28, 1
      %p109 = scmp.ne.s32.totalorder %s104, %s106
      %p110 = scmp.eq.s32.totalorder %s28, 0
      %p111 = por %p109, %p110
      %p112 = scmp.ne.s32.totalorder %s104, %s106
      %p113 = scmp.eq.s32.totalorder %s33, 1
      %p114 = por %p112, %p113
      %p115 = scmp.ne.s32.totalorder %s106, %s107
      %p116 = scmp.eq.s32.totalorder %s33, 0
      %p117 = por %p115, %p116
      %p118 = scmp.ne.s32.totalorder %s106, %s107
      %p119 = scmp.eq.s32.totalorder %s34, 1
      %p120 = por %p118, %p119
      %p122 = scmp.ne.s32.totalorder %s107, %s121
      %p123 = scmp.eq.s32.totalorder %s34, 0
      %p124 = por %p122, %p123
      %s126 = sadd.s32 %s125, 1
      %p129 = scmp.eq.s32.totalorder %s28, 1
      %p130 = scmp.ne.s32.totalorder %s125, %s127
      %p131 = scmp.eq.s32.totalorder %s28, 0
      %p132 = por %p130, %p131
      %p133 = scmp.ne.s32.totalorder %s125, %s127
      %p134 = scmp.eq.s32.totalorder %s33, 1
      %p135 = por %p133, %p134
      %p136 = scmp.ne.s32.totalorder %s127, %s128
      %p137 = scmp.eq.s32.totalorder %s33, 0
      %p138 = por %p136, %p137
      %p139 = scmp.ne.s32.totalorder %s127, %s128
      %p140 = scmp.eq.s32.totalorder %s34, 1
      %p141 = por %p139, %p140
      %p143 = scmp.ne.s32.totalorder %s128, %s142
      %p144 = scmp.eq.s32.totalorder %s34, 0
      %p145 = por %p143, %p144
      %s147 = sadd.s32 %s146, 1
      %p150 = scmp.eq.s32.totalorder %s28, 1
      %p151 = scmp.ne.s32.totalorder %s146, %s148
      %p152 = scmp.eq.s32.totalorder %s28, 0
      %p153 = por %p151, %p152
      %p154 = scmp.ne.s32.totalorder %s146, %s148
      %p155 = scmp.eq.s32.totalorder %s33, 1
      %p156 = por %p154, %p155
      %p157 = scmp.ne.s32.totalorder %s148, %s149
      %p158 = scmp.eq.s32.totalorder %s33, 0
      %p159 = por %p157, %p158
      %p160 = scmp.ne.s32.totalorder %s148, %s149
      %p161 = scmp.eq.s32.totalorder %s34, 1
      %p162 = por %p160, %p161
      %p164 = scmp.ne.s32.totalorder %s149, %s163
      %p165 = scmp.eq.s32.totalorder %s34, 0
      %p166 = por %p164, %p165
      %s168 = sadd.s32 %s167, 1
      %p171 = scmp.eq.s32.totalorder %s28, 1
      %p172 = scmp.ne.s32.totalorder %s167, %s169
      %p173 = scmp.eq.s32.totalorder %s28, 0
      %p174 = por %p172, %p173
      %p175 = scmp.ne.s32.totalorder %s167, %s169
      %p176 = scmp.eq.s32.totalorder %s33, 1
      %p177 = por %p175, %p176
      %p178 = scmp.ne.s32.totalorder %s169, %s170
      %p179 = scmp.eq.s32.totalorder %s33, 0
      %p180 = por %p178, %p179
      %p181 = scmp.ne.s32.totalorder %s169, %s170
      %p182 = scmp.eq.s32.totalorder %s34, 1
      %p183 = por %p181, %p182
      %p185 = scmp.ne.s32.totalorder %s170, %s184
      %p186 = scmp.eq.s32.totalorder %s34, 0
      %p187 = por %p185, %p186
      %s189 = sadd.s32 %s188, 1
      %p192 = scmp.eq.s32.totalorder %s28, 1
      %p193 = scmp.ne.s32.totalorder %s188, %s190
      %p194 = scmp.eq.s32.totalorder %s28, 0
      %p195 = por %p193, %p194
      %p196 = scmp.ne.s32.totalorder %s188, %s190
      %p197 = scmp.eq.s32.totalorder %s33, 1
      %p198 = por %p196, %p197
      %p199 = scmp.ne.s32.totalorder %s190, %s191
      %p200 = scmp.eq.s32.totalorder %s33, 0
      %p201 = por %p199, %p200
      %p202 = scmp.ne.s32.totalorder %s190, %s191
      %p203 = scmp.eq.s32.totalorder %s34, 1
      %p204 = por %p202, %p203
      %p206 = scmp.ne.s32.totalorder %s191, %s205
      %p207 = scmp.eq.s32.totalorder %s34, 0
      %p208 = por %p206, %p207
      %s210 = sadd.s32 %s209, 1
      %p213 = scmp.eq.s32.totalorder %s28, 1
      %p214 = scmp.ne.s32.totalorder %s209, %s211
      %p215 = scmp.eq.s32.totalorder %s28, 0
      %p216 = por %p214, %p215
      %p217 = scmp.ne.s32.totalorder %s209, %s211
      %p218 = scmp.eq.s32.totalorder %s33, 1
      %p219 = por %p217, %p218
      %p220 = scmp.ne.s32.totalorder %s211, %s212
      %p221 = scmp.eq.s32.totalorder %s33, 0
      %p222 = por %p220, %p221
      %p223 = scmp.ne.s32.totalorder %s211, %s212
      %p224 = scmp.eq.s32.totalorder %s34, 1
      %p225 = por %p223, %p224
      %p227 = scmp.ne.s32.totalorder %s212, %s226
      %p228 = scmp.eq.s32.totalorder %s34, 0
      %p229 = por %p227, %p228
      %s231 = sadd.s32 %s230, 1
      %p234 = scmp.eq.s32.totalorder %s28, 1
      %p235 = scmp.ne.s32.totalorder %s230, %s232
      %p236 = scmp.eq.s32.totalorder %s28, 0
      %p237 = por %p235, %p236
      %p238 = scmp.ne.s32.totalorder %s230, %s232
      %p239 = scmp.eq.s32.totalorder %s33, 1
      %p240 = por %p238, %p239
      %p241 = scmp.ne.s32.totalorder %s232, %s233
      %p242 = scmp.eq.s32.totalorder %s33, 0
      %p243 = por %p241, %p242
      %p244 = scmp.ne.s32.totalorder %s232, %s233
      %p245 = scmp.eq.s32.totalorder %s34, 1
      %p246 = por %p244, %p245
      %p248 = scmp.ne.s32.totalorder %s233, %s247
      %p249 = scmp.eq.s32.totalorder %s34, 0
      %p250 = por %p248, %p249
      %s252 = sadd.s32 %s251, 1
      %p255 = scmp.eq.s32.totalorder %s28, 1
      %p256 = scmp.ne.s32.totalorder %s251, %s253
      %p257 = scmp.eq.s32.totalorder %s28, 0
      %p258 = por %p256, %p257
      %p259 = scmp.ne.s32.totalorder %s251, %s253
      %p260 = scmp.eq.s32.totalorder %s33, 1
      %p261 = por %p259, %p260
      %p262 = scmp.ne.s32.totalorder %s253, %s254
      %p263 = scmp.eq.s32.totalorder %s33, 0
      %p264 = por %p262, %p263
      %p265 = scmp.ne.s32.totalorder %s253, %s254
      %p266 = scmp.eq.s32.totalorder %s34, 1
      %p267 = por %p265, %p266
      %p269 = scmp.ne.s32.totalorder %s254, %s268
      %p270 = scmp.eq.s32.totalorder %s34, 0
      %p271 = por %p269, %p270
      %s272 = ssub.s32 %s28, %s35
      %p273 = scmp.eq.s32.totalorder %s272, 0
      %s275 = sadd.s32 %s274, 1
      %s276 = scalar_select %p273, %s274, %s275
      %p279 = pneg %p273
      %p280 = scmp.eq.s32.totalorder %s28, 1
      %p281 = por %p279, %p280
      %p282 = scmp.ne.s32.totalorder %s274, %s277
      %p283 = scmp.eq.s32.totalorder %s28, 0
      %p284 = por %p282, %p283
      %p285 = scmp.ne.s32.totalorder %s274, %s277
      %p286 = scmp.eq.s32.totalorder %s33, 1
      %p287 = por %p285, %p286
      %p288 = scmp.ne.s32.totalorder %s277, %s278
      %p289 = scmp.eq.s32.totalorder %s33, 0
      %p290 = por %p288, %p289
      %p291 = scmp.ne.s32.totalorder %s277, %s278
      %p292 = scmp.eq.s32.totalorder %s34, 1
      %p293 = por %p291, %p292
      %p295 = scmp.ne.s32.totalorder %s278, %s294
      %p296 = scmp.eq.s32.totalorder %s34, 0
      %p297 = por %p295, %p296
      %p298 = scmp.le.s32.totalorder 1, %s28
      %p299 = scmp.lt.s32.totalorder %s28, 3
      %p300 = pnand %p298, %p299
      %p301 = pneg %p300
      // Predicated region
      $region9: #{tpu_custom_call.1} parent=5 // pred_check
        _
      $region10: #{tpu_custom_call.1} parent=5 // pred_check_branch
        %303 = sbr.rel (%p300) target = $region12
      $region11: #{tpu_custom_call.1} parent=5 // pred_region
        %s304 = ssub.s32 %s28, 1
        // Predicated region
        $region13: #{tpu_custom_call.1} parent=11 // pred_check
          %p305 = pneg %p75
        $region14: #{tpu_custom_call.1} parent=11 // pred_check_branch
          %307 = sbr.rel (%p305) target = $region16
        $region15: #{tpu_custom_call.1} parent=11 // pred_region
          %s309 = ssub.s32 1024, 1024
          %310 = vsyncadd [#allocation6], %s309
          %s311 = sshll.u32 [#allocation5], 4
          %s312 = int_to_ptr.vmem [resolvable:$true] %s311
          %317 = dma.hbm_to_vmem [thread:$0]  %s1, 1024, %s312, [#allocation6], 64, 64, 4
        $region16: #{tpu_custom_call.1} parent=11 // pred_fallthru
          _
        // Predicated region
        $region17: #{tpu_custom_call.1} parent=11 // pred_check
          %p318 = pneg %p96
        $region18: #{tpu_custom_call.1} parent=11 // pred_check_branch
          %320 = sbr.rel (%p318) target = $region20
        $region19: #{tpu_custom_call.1} parent=11 // pred_region
          %s322 = ssub.s32 1024, 1024
          %323 = vsyncadd [#allocation6], %s322
          %s324 = sshll.u32 [#allocation7], 4
          %s325 = int_to_ptr.vmem [resolvable:$true] %s324
          %330 = dma.hbm_to_vmem [thread:$0]  %s2, 1024, %s325, [#allocation6], 64, 64, 4
        $region20: #{tpu_custom_call.1} parent=11 // pred_fallthru
          _
        // Predicated region
        $region21: #{tpu_custom_call.1} parent=11 // pred_check
          %p331 = pneg %p117
        $region22: #{tpu_custom_call.1} parent=11 // pred_check_branch
          %333 = sbr.rel (%p331) target = $region24
        $region23: #{tpu_custom_call.1} parent=11 // pred_region
          %s335 = ssub.s32 16, 16
          %336 = vsyncadd [#allocation9], %s335
          %s338 = sshll.u32 [#allocation8], 4
          %s339 = int_to_ptr.vmem [resolvable:$true] %s338
          %341 = dma.hbm_to_vmem [thread:$0]  %s3, 16, %s339, [#allocation9]
        $region24: #{tpu_custom_call.1} parent=11 // pred_fallthru
          _
        // Predicated region
        $region25: #{tpu_custom_call.1} parent=11 // pred_check
          %p342 = pneg %p138
        $region26: #{tpu_custom_call.1} parent=11 // pred_check_branch
          %344 = sbr.rel (%p342) target = $region28
        $region27: #{tpu_custom_call.1} parent=11 // pred_region
          %s346 = ssub.s32 16, 16
          %347 = vsyncadd [#allocation9], %s346
          %s349 = sshll.u32 [#allocation10], 4
          %s350 = int_to_ptr.vmem [resolvable:$true] %s349
          %352 = dma.hbm_to_vmem [thread:$0]  %s4, 16, %s350, [#allocation9]
        $region28: #{tpu_custom_call.1} parent=11 // pred_fallthru
          _
        // Predicated region
        $region29: #{tpu_custom_call.1} parent=11 // pred_check
          %p353 = pneg %p159
        $region30: #{tpu_custom_call.1} parent=11 // pred_check_branch
          %355 = sbr.rel (%p353) target = $region32
        $region31: #{tpu_custom_call.1} parent=11 // pred_region
          %s357 = ssub.s32 64, 64
          %358 = vsyncadd [#allocation12], %s357
          %s360 = sshll.u32 [#allocation11], 4
          %s361 = int_to_ptr.vmem [resolvable:$true] %s360
          %363 = dma.hbm_to_vmem [thread:$0]  %s5, 64, %s361, [#allocation12]
        $region32: #{tpu_custom_call.1} parent=11 // pred_fallthru
          _
        // Predicated region
        $region33: #{tpu_custom_call.1} parent=11 // pred_check
          %p364 = pneg %p180
        $region34: #{tpu_custom_call.1} parent=11 // pred_check_branch
          %366 = sbr.rel (%p364) target = $region36
        $region35: #{tpu_custom_call.1} parent=11 // pred_region
          %s368 = ssub.s32 16, 16
          %369 = vsyncadd [#allocation12], %s368
          %s371 = sshll.u32 [#allocation13], 4
          %s372 = int_to_ptr.vmem [resolvable:$true] %s371
          %374 = dma.hbm_to_vmem [thread:$0]  %s6, 16, %s372, [#allocation12]
        $region36: #{tpu_custom_call.1} parent=11 // pred_fallthru
          _
        // Predicated region
        $region37: #{tpu_custom_call.1} parent=11 // pred_check
          %p375 = pneg %p201
        $region38: #{tpu_custom_call.1} parent=11 // pred_check_branch
          %377 = sbr.rel (%p375) target = $region40
        $region39: #{tpu_custom_call.1} parent=11 // pred_region
          %s379 = ssub.s32 16, 16
          %380 = vsyncadd [#allocation15], %s379
          %s382 = sshll.u32 [#allocation14], 4
          %s383 = int_to_ptr.vmem [resolvable:$true] %s382
          %385 = dma.hbm_to_vmem [thread:$0]  %s7, 16, %s383, [#allocation15]
        $region40: #{tpu_custom_call.1} parent=11 // pred_fallthru
          _
        // Predicated region
        $region41: #{tpu_custom_call.1} parent=11 // pred_check
          %p386 = pneg %p222
        $region42: #{tpu_custom_call.1} parent=11 // pred_check_branch
          %388 = sbr.rel (%p386) target = $region44
        $region43: #{tpu_custom_call.1} parent=11 // pred_region
          %s390 = ssub.s32 16, 16
          %391 = vsyncadd [#allocation15], %s390
          %s393 = sshll.u32 [#allocation16], 4
          %s394 = int_to_ptr.vmem [resolvable:$true] %s393
          %396 = dma.hbm_to_vmem [thread:$0]  %s8, 16, %s394, [#allocation15]
        $region44: #{tpu_custom_call.1} parent=11 // pred_fallthru
          _
        // Predicated region
        $region45: #{tpu_custom_call.1} parent=11 // pred_check
          %p397 = pneg %p243
        $region46: #{tpu_custom_call.1} parent=11 // pred_check_branch
          %399 = sbr.rel (%p397) target = $region48
        $region47: #{tpu_custom_call.1} parent=11 // pred_region
          %s401 = ssub.s32 1024, 1024
          %402 = vsyncadd [#allocation18], %s401
          %s403 = sshll.u32 [#allocation17], 4
          %s404 = int_to_ptr.vmem [resolvable:$true] %s403
          %409 = dma.hbm_to_vmem [thread:$0]  %s9, 1024, %s404, [#allocation18], 64, 64, 4
        $region48: #{tpu_custom_call.1} parent=11 // pred_fallthru
          _
        // Predicated region
        $region49: #{tpu_custom_call.1} parent=11 // pred_check
          %p410 = pneg %p264
        $region50: #{tpu_custom_call.1} parent=11 // pred_check_branch
          %412 = sbr.rel (%p410) target = $region52
        $region51: #{tpu_custom_call.1} parent=11 // pred_region
          %s414 = ssub.s32 16, 16
          %415 = vsyncadd [#allocation18], %s414
          %s417 = sshll.u32 [#allocation19], 4
          %s418 = int_to_ptr.vmem [resolvable:$true] %s417
          %420 = dma.hbm_to_vmem [thread:$0]  %s10, 16, %s418, [#allocation18]
        $region52: #{tpu_custom_call.1} parent=11 // pred_fallthru
          _
      $region12: #{tpu_custom_call.1} parent=5 // pred_fallthru
        _
      %p421 = scmp.lt.s32.totalorder %s28, 2
      // Predicated region
      $region53: #{tpu_custom_call.1} parent=5 // pred_check
        %p422 = pneg %p421
      $region54: #{tpu_custom_call.1} parent=5 // pred_check_branch
        %424 = sbr.rel (%p422) target = $region56
      $region55: #{tpu_custom_call.1} parent=5 // pred_region
        // Predicated region
        $region57: #{tpu_custom_call.1} parent=55 // pred_check
          %p425 = pneg %p48
        $region58: #{tpu_custom_call.1} parent=55 // pred_check_branch
          %427 = sbr.rel (%p425) target = $region60
        $region59: #{tpu_custom_call.1} parent=55 // pred_region
          %s428 = sand.u32 %s38, 1
          %s429 = scalar_lea.sflag [#allocation3], %s428
          %s430 = sand.u32 %s38, 1
          %s431 = smul.addr %s430, 8
          %s432 = scalar_lea.vmem [#allocation2], %s431
          %s434 = ssub.s32 128, 128
          %435 = vsyncadd %s429, %s434
          %s436 = smul.addr %s28, 2
          %s437 = smul.addr %s436, 64
          %s438 = scalar_lea.hbm %s0, %s437
          %s439 = sshll.u32 %s432, 4
          %s440 = int_to_ptr.vmem [resolvable:$true] %s439
          %445 = dma.hbm_to_vmem [thread:$0]  %s438, 128, %s440, %s429, 64, 64, 4
        $region60: #{tpu_custom_call.1} parent=55 // pred_fallthru
          _
      $region56: #{tpu_custom_call.1} parent=5 // pred_fallthru
        _
      %p446 = scmp.le.s32.totalorder 1, %s28
      %p447 = scmp.lt.s32.totalorder %s28, 3
      %p448 = pnand %p446, %p447
      %p449 = pneg %p448
      // Predicated region
      $region61: #{tpu_custom_call.1} parent=5 // pred_check
        _
      $region62: #{tpu_custom_call.1} parent=5 // pred_check_branch
        %451 = sbr.rel (%p448) target = $region64
      $region63: #{tpu_custom_call.1} parent=5 // pred_region
        %s452 = ssub.s32 %s28, 1
        %s453 = sand.u32 %s41, 1
        %s454 = scalar_lea.sflag [#allocation3], %s453
        %s455 = sand.u32 %s41, 1
        %s456 = smul.addr %s455, 8
        %s457 = scalar_lea.vmem [#allocation2], %s456
        // Predicated region
        $region65: #{tpu_custom_call.1} parent=63 // pred_check
          %p458 = pneg %p54
        $region66: #{tpu_custom_call.1} parent=63 // pred_check_branch
          %460 = sbr.rel (%p458) target = $region68
        $region67: #{tpu_custom_call.1} parent=63 // pred_region
          %461 = dma.done %s454, 128
        $region68: #{tpu_custom_call.1} parent=63 // pred_fallthru
          _
        // Predicated region
        $region69: #{tpu_custom_call.1} parent=63 // pred_check
          %p462 = pneg %p75
        $region70: #{tpu_custom_call.1} parent=63 // pred_check_branch
          %464 = sbr.rel (%p462) target = $region72
        $region71: #{tpu_custom_call.1} parent=63 // pred_region
          %465 = dma.done [#allocation6], 1024
        $region72: #{tpu_custom_call.1} parent=63 // pred_fallthru
          _
        // Predicated region
        $region73: #{tpu_custom_call.1} parent=63 // pred_check
          %p466 = pneg %p96
        $region74: #{tpu_custom_call.1} parent=63 // pred_check_branch
          %468 = sbr.rel (%p466) target = $region76
        $region75: #{tpu_custom_call.1} parent=63 // pred_region
          %469 = dma.done [#allocation6], 1024
        $region76: #{tpu_custom_call.1} parent=63 // pred_fallthru
          _
        // Predicated region
        $region77: #{tpu_custom_call.1} parent=63 // pred_check
          %p470 = pneg %p117
        $region78: #{tpu_custom_call.1} parent=63 // pred_check_branch
          %472 = sbr.rel (%p470) target = $region80
        $region79: #{tpu_custom_call.1} parent=63 // pred_region
          %473 = dma.done [#allocation9], 16
        $region80: #{tpu_custom_call.1} parent=63 // pred_fallthru
          _
        // Predicated region
        $region81: #{tpu_custom_call.1} parent=63 // pred_check
          %p474 = pneg %p138
        $region82: #{tpu_custom_call.1} parent=63 // pred_check_branch
          %476 = sbr.rel (%p474) target = $region84
        $region83: #{tpu_custom_call.1} parent=63 // pred_region
          %477 = dma.done [#allocation9], 16
        $region84: #{tpu_custom_call.1} parent=63 // pred_fallthru
          _
        // Predicated region
        $region85: #{tpu_custom_call.1} parent=63 // pred_check
          %p478 = pneg %p159
        $region86: #{tpu_custom_call.1} parent=63 // pred_check_branch
          %480 = sbr.rel (%p478) target = $region88
        $region87: #{tpu_custom_call.1} parent=63 // pred_region
          %481 = dma.done [#allocation12], 64
        $region88: #{tpu_custom_call.1} parent=63 // pred_fallthru
          _
        // Predicated region
        $region89: #{tpu_custom_call.1} parent=63 // pred_check
          %p482 = pneg %p180
        $region90: #{tpu_custom_call.1} parent=63 // pred_check_branch
          %484 = sbr.rel (%p482) target = $region92
        $region91: #{tpu_custom_call.1} parent=63 // pred_region
          %485 = dma.done [#allocation12], 16
        $region92: #{tpu_custom_call.1} parent=63 // pred_fallthru
          _
        // Predicated region
        $region93: #{tpu_custom_call.1} parent=63 // pred_check
          %p486 = pneg %p201
        $region94: #{tpu_custom_call.1} parent=63 // pred_check_branch
          %488 = sbr.rel (%p486) target = $region96
        $region95: #{tpu_custom_call.1} parent=63 // pred_region
          %489 = dma.done [#allocation15], 16
        $region96: #{tpu_custom_call.1} parent=63 // pred_fallthru
          _
        // Predicated region
        $region97: #{tpu_custom_call.1} parent=63 // pred_check
          %p490 = pneg %p222
        $region98: #{tpu_custom_call.1} parent=63 // pred_check_branch
          %492 = sbr.rel (%p490) target = $region100
        $region99: #{tpu_custom_call.1} parent=63 // pred_region
          %493 = dma.done [#allocation15], 16
        $region100: #{tpu_custom_call.1} parent=63 // pred_fallthru
          _
        // Predicated region
        $region101: #{tpu_custom_call.1} parent=63 // pred_check
          %p494 = pneg %p243
        $region102: #{tpu_custom_call.1} parent=63 // pred_check_branch
          %496 = sbr.rel (%p494) target = $region104
        $region103: #{tpu_custom_call.1} parent=63 // pred_region
          %497 = dma.done [#allocation18], 1024
        $region104: #{tpu_custom_call.1} parent=63 // pred_fallthru
          _
        // Predicated region
        $region105: #{tpu_custom_call.1} parent=63 // pred_check
          %p498 = pneg %p264
        $region106: #{tpu_custom_call.1} parent=63 // pred_check_branch
          %500 = sbr.rel (%p498) target = $region108
        $region107: #{tpu_custom_call.1} parent=63 // pred_region
          %501 = dma.done [#allocation18], 16
        $region108: #{tpu_custom_call.1} parent=63 // pred_fallthru
          _
        %s502 = sand.u32 %s41, 1
        %s503 = scalar_lea.sflag [#allocation3], %s502
        %s504 = sand.u32 %s41, 1
        %s505 = smul.addr %s504, 8
        %s506 = scalar_lea.vmem [#allocation2], %s505
        %p507 = pneg %p54
        %p508 = pneg %p51
        %p509 = pneg %p75
        %p510 = pneg %p72
        %p511 = pneg %p96
        %p512 = pneg %p93
        %p513 = pneg %p117
        %p514 = pneg %p114
        %p515 = pneg %p138
        %p516 = pneg %p135
        %p517 = pneg %p159
        %p518 = pneg %p156
        %p519 = pneg %p180
        %p520 = pneg %p177
        %p521 = pneg %p201
        %p522 = pneg %p198
        %p523 = pneg %p222
        %p524 = pneg %p219
        %p525 = pneg %p243
        %p526 = pneg %p240
        %p527 = pneg %p264
        %p528 = pneg %p261
        %p529 = pneg %p290
        %p530 = pneg %p287
        %s531 = sand.u32 %s277, 1
        %s532 = scalar_lea.sflag [#allocation4], %s531
        %s533 = sand.u32 %s277, 1
        %s534 = smul.addr %s533, 16
        %s535 = scalar_lea.vmem [#allocation20], %s534
        %v537 = vld [vmem:[%s457] sm:$0xf]
        %v538 = vld [vmem:[%s457 + $0x4] sm:$0xf]
        %v539 = vld [vmem:[#allocation5] sm:$0xf]
        %v540 = vld [vmem:[#allocation5 + $0x4] sm:$0xf]
        %v541 = vld [vmem:[#allocation5 + $0x8] sm:$0xf]
        %v542 = vld [vmem:[#allocation5 + $0xc] sm:$0xf]
        %v543 = vld [vmem:[#allocation5 + $0x10] sm:$0xf]
        %v544 = vld [vmem:[#allocation5 + $0x14] sm:$0xf]
        %v545 = vld [vmem:[#allocation5 + $0x18] sm:$0xf]
        %v546 = vld [vmem:[#allocation5 + $0x1c] sm:$0xf]
        %v547 = vld [vmem:[#allocation5 + $0x20] sm:$0xf]
        %v548 = vld [vmem:[#allocation5 + $0x24] sm:$0xf]
        %v549 = vld [vmem:[#allocation5 + $0x28] sm:$0xf]
        %v550 = vld [vmem:[#allocation5 + $0x2c] sm:$0xf]
        %v551 = vld [vmem:[#allocation5 + $0x30] sm:$0xf]
        %v552 = vld [vmem:[#allocation5 + $0x34] sm:$0xf]
        %v553 = vld [vmem:[#allocation5 + $0x38] sm:$0xf]
        %v554 = vld [vmem:[#allocation5 + $0x3c] sm:$0xf]
        %v555 = vld [vmem:[#allocation8] sm:$0x1]
        %v557 = vlaneseq
        %v558 = vshrl.u32 %v557, 7
        %v559 = vsub.s32 0, %v558
        %v560 = vrot.slane %v555, %v559
        %v564 = vunpack.c.l.b16 %v537
        %v565 = vunpack.c.l.b16 %v538
        %v566 = vpack.c.b16 %v565, %v564
        %v584 = vunpack.c.l.b16 %v539
        %v585 = vunpack.c.l.b16 %v540
        %v586 = vunpack.c.l.b16 %v541
        %v587 = vunpack.c.l.b16 %v542
        %v588 = vunpack.c.l.b16 %v543
        %v589 = vunpack.c.l.b16 %v544
        %v590 = vunpack.c.l.b16 %v545
        %v591 = vunpack.c.l.b16 %v546
        %v592 = vunpack.c.l.b16 %v547
        %v593 = vunpack.c.l.b16 %v548
        %v594 = vunpack.c.l.b16 %v549
        %v595 = vunpack.c.l.b16 %v550
        %v596 = vunpack.c.l.b16 %v551
        %v597 = vunpack.c.l.b16 %v552
        %v598 = vunpack.c.l.b16 %v553
        %v599 = vunpack.c.l.b16 %v554
        %v600 = vpack.c.b16 %v585, %v584
        %v601 = vpack.c.b16 %v587, %v586
        %v602 = vpack.c.b16 %v589, %v588
        %v603 = vpack.c.b16 %v591, %v590
        %v604 = vpack.c.b16 %v593, %v592
        %v605 = vpack.c.b16 %v595, %v594
        %v606 = vpack.c.b16 %v597, %v596
        %v607 = vpack.c.b16 %v599, %v598
        %616 = vmatprep.subr.bf16.mxu0 0
        %617 = vmatpush1.bf16.msra.mxu0 %v600
        %618 = vmatprep.subr.bf16.mxu0 0
        %619 = vmatpush1.bf16.msra.mxu0 %v601
        %620 = vmatprep.subr.bf16.mxu0 0
        %621 = vmatpush1.bf16.msra.mxu0 %v602
        %622 = vmatprep.subr.bf16.mxu0 0
        %623 = vmatpush1.bf16.msra.mxu0 %v603
        %624 = vmatprep.subr.bf16.mxu0 0
        %625 = vmatpush1.bf16.msra.mxu0 %v604
        %626 = vmatprep.subr.bf16.mxu0 0
        %627 = vmatpush1.bf16.msra.mxu0 %v605
        %628 = vmatprep.subr.bf16.mxu0 0
        %629 = vmatpush1.bf16.msra.mxu0 %v606
        %630 = vmatprep.subr.bf16.mxu0 0
        %631 = vmatpush1.bf16.msra.mxu0 %v607
        %632 = vmatprep.subr.bf16.mxu0 0
        %633 = vmatpush1.bf16.msra.mxu0 0
        %634 = vmatprep.subr.bf16.mxu0 0
        %635 = vmatpush1.bf16.msra.mxu0 0
        %636 = vmatprep.subr.bf16.mxu0 0
        %637 = vmatpush1.bf16.msra.mxu0 0
        %638 = vmatprep.subr.bf16.mxu0 0
        %639 = vmatpush1.bf16.msra.mxu0 0
        %640 = vmatprep.subr.bf16.mxu0 0
        %641 = vmatpush1.bf16.msra.mxu0 0
        %642 = vmatprep.subr.bf16.mxu0 0
        %643 = vmatpush1.bf16.msra.mxu0 0
        %644 = vmatprep.subr.bf16.mxu0 0
        %645 = vmatpush1.bf16.msra.mxu0 0
        %646 = vmatprep.subr.bf16.mxu0 0
        %647 = vmatpush1.bf16.msra.mxu0 0
        %648 = vmatprep.mubr.bf16.mxu0 0
        %649 = vmatmul.mubr.bf16.gmra.mrb[0].mxu0 %v566
        %v650 = vpop.f32.mrb[0].mxu0
        %v651 = vadd.f32 %v560, %v650
        %v652 = vpop.f32.mrb[0].mxu0
        %v653 = vpop.f32.mrb[0].mxu0
        %v654 = vadd.f32 %v560, %v653
        %v655 = vpop.f32.mrb[0].mxu0
        %656 = vdwg.mxu0
        %v657 = vld [vmem:[#allocation7] sm:$0xf]
        %v658 = vld [vmem:[#allocation7 + $0x4] sm:$0xf]
        %v659 = vld [vmem:[#allocation7 + $0x8] sm:$0xf]
        %v660 = vld [vmem:[#allocation7 + $0xc] sm:$0xf]
        %v661 = vld [vmem:[#allocation7 + $0x10] sm:$0xf]
        %v662 = vld [vmem:[#allocation7 + $0x14] sm:$0xf]
        %v663 = vld [vmem:[#allocation7 + $0x18] sm:$0xf]
        %v664 = vld [vmem:[#allocation7 + $0x1c] sm:$0xf]
        %v665 = vld [vmem:[#allocation7 + $0x20] sm:$0xf]
        %v666 = vld [vmem:[#allocation7 + $0x24] sm:$0xf]
        %v667 = vld [vmem:[#allocation7 + $0x28] sm:$0xf]
        %v668 = vld [vmem:[#allocation7 + $0x2c] sm:$0xf]
        %v669 = vld [vmem:[#allocation7 + $0x30] sm:$0xf]
        %v670 = vld [vmem:[#allocation7 + $0x34] sm:$0xf]
        %v671 = vld [vmem:[#allocation7 + $0x38] sm:$0xf]
        %v672 = vld [vmem:[#allocation7 + $0x3c] sm:$0xf]
        %v673 = vld [vmem:[#allocation10] sm:$0x1]
        %v675 = vlaneseq
        %v676 = vshrl.u32 %v675, 7
        %v677 = vsub.s32 0, %v676
        %v678 = vrot.slane %v673, %v677
        %v696 = vunpack.c.l.b16 %v657
        %v697 = vunpack.c.l.b16 %v658
        %v698 = vunpack.c.l.b16 %v659
        %v699 = vunpack.c.l.b16 %v660
        %v700 = vunpack.c.l.b16 %v661
        %v701 = vunpack.c.l.b16 %v662
        %v702 = vunpack.c.l.b16 %v663
        %v703 = vunpack.c.l.b16 %v664
        %v704 = vunpack.c.l.b16 %v665
        %v705 = vunpack.c.l.b16 %v666
        %v706 = vunpack.c.l.b16 %v667
        %v707 = vunpack.c.l.b16 %v668
        %v708 = vunpack.c.l.b16 %v669
        %v709 = vunpack.c.l.b16 %v670
        %v710 = vunpack.c.l.b16 %v671
        %v711 = vunpack.c.l.b16 %v672
        %v712 = vpack.c.b16 %v697, %v696
        %v713 = vpack.c.b16 %v699, %v698
        %v714 = vpack.c.b16 %v701, %v700
        %v715 = vpack.c.b16 %v703, %v702
        %v716 = vpack.c.b16 %v705, %v704
        %v717 = vpack.c.b16 %v707, %v706
        %v718 = vpack.c.b16 %v709, %v708
        %v719 = vpack.c.b16 %v711, %v710
        %728 = vmatprep.subr.bf16.mxu0 0
        %729 = vmatpush1.bf16.msra.mxu0 %v712
        %730 = vmatprep.subr.bf16.mxu0 0
        %731 = vmatpush1.bf16.msra.mxu0 %v713
        %732 = vmatprep.subr.bf16.mxu0 0
        %733 = vmatpush1.bf16.msra.mxu0 %v714
        %734 = vmatprep.subr.bf16.mxu0 0
        %735 = vmatpush1.bf16.msra.mxu0 %v715
        %736 = vmatprep.subr.bf16.mxu0 0
        %737 = vmatpush1.bf16.msra.mxu0 %v716
        %738 = vmatprep.subr.bf16.mxu0 0
        %739 = vmatpush1.bf16.msra.mxu0 %v717
        %740 = vmatprep.subr.bf16.mxu0 0
        %741 = vmatpush1.bf16.msra.mxu0 %v718
        %742 = vmatprep.subr.bf16.mxu0 0
        %743 = vmatpush1.bf16.msra.mxu0 %v719
        %744 = vmatprep.subr.bf16.mxu0 0
        %745 = vmatpush1.bf16.msra.mxu0 0
        %746 = vmatprep.subr.bf16.mxu0 0
        %747 = vmatpush1.bf16.msra.mxu0 0
        %748 = vmatprep.subr.bf16.mxu0 0
        %749 = vmatpush1.bf16.msra.mxu0 0
        %750 = vmatprep.subr.bf16.mxu0 0
        %751 = vmatpush1.bf16.msra.mxu0 0
        %752 = vmatprep.subr.bf16.mxu0 0
        %753 = vmatpush1.bf16.msra.mxu0 0
        %754 = vmatprep.subr.bf16.mxu0 0
        %755 = vmatpush1.bf16.msra.mxu0 0
        %756 = vmatprep.subr.bf16.mxu0 0
        %757 = vmatpush1.bf16.msra.mxu0 0
        %758 = vmatprep.subr.bf16.mxu0 0
        %759 = vmatpush1.bf16.msra.mxu0 0
        %760 = vmatprep.mubr.bf16.mxu0 0
        %761 = vmatmul.mubr.bf16.gmra.mrb[0].mxu0 %v566
        %v762 = vpop.f32.mrb[0].mxu0
        %v763 = vadd.f32 %v678, %v762
        %v764 = vpop.f32.mrb[0].mxu0
        %v765 = vpop.f32.mrb[0].mxu0
        %v766 = vadd.f32 %v678, %v765
        %v767 = vpop.f32.mrb[0].mxu0
        %768 = vdwg.mxu0
        %v769 = vxor.u32 %v763, 2147483648
        %v770 = vxor.u32 %v766, 2147483648
        %v771 = vmul.f32 %v769, 1.442695
        %v772 = vpow.pop %v771
        %v773 = vmul.f32 %v770, 1.442695
        %v774 = vpow.pop %v773
        %v775 = vadd.f32 %v772, 1.0
        %v776 = vadd.f32 %v774, 1.0
        %v777 = vrcp.pop %v775
        %v778 = vmul.f32 1.0, %v777
        %v779 = vrcp.pop %v776
        %v780 = vmul.f32 1.0, %v779
        %v781 = vmul.f32 %v651, %v778
        %v782 = vmul.f32 %v654, %v780
        %v783 = vlaneseq
        %v784 = vshrl.u32 %v783, 7
        %v785 = vadd.s32 %v784, 8
        %vm786 = vcmp.lt.s32.totalorder %v784, 0
        %v787 = vsub.s32 0, %v784
        %v788 = vsel %vm786, %v787, %v784
        %v789 = vshrl.u32 %v788, 4
        %v790 = vand.u32 %v788, 15
        %v791 = vsub.s32 0, %v790
        %v792 = vsel %vm786, %v791, %v790
        %vm793 = vcmp.lt.s32.totalorder %v785, 0
        %v794 = vsub.s32 0, %v785
        %v795 = vsel %vm793, %v794, %v785
        %v796 = vshrl.u32 %v795, 4
        %v797 = vand.u32 %v795, 15
        %v798 = vsub.s32 0, %v797
        %v799 = vsel %vm793, %v798, %v797
        %vm800 = vcmp.ne.s32.totalorder %v792, 0
        %vm801 = vcmp.ne.s32.totalorder %v799, 0
        %vm802 = vcmp.lt.s32.totalorder %v792, 0
        %vm803 = vcmp.lt.s32.totalorder %v799, 0
        %vm804 = vmand %vm802, %vm800
        %vm805 = vmand %vm803, %vm801
        %v806 = vadd.s32 %v792, 16
        %v807 = vadd.s32 %v799, 16
        %v808 = vsel %vm804, %v806, %v792
        %v809 = vsel %vm805, %v807, %v799
        %v810 = vld [vmem:[#allocation11] sm:$0x1]
        %v811 = vrot.slane %v781, 7
        %v812 = vrot.slane %v782, 7
        %vm813 = vcmp.lt.s32.totalorder %v784, 1
        %v814 = vsel %vm813, %v811, %v812
        %v815 = vsel %vm813, %v812, %v811
        %vm816 = vcmp.ge.s32.totalorder %v808, 1
        %vm817 = vcmp.ge.s32.totalorder %v809, 1
        %v818 = vsel %vm816, 1, 0
        %v819 = vsel %vm817, 1, 0
        %vm820 = vcmp.eq.s32.totalorder %v818, 1
        %vm821 = vcmp.eq.s32.totalorder %v819, 1
        %v822 = vsel %vm820, %v815, 0.0
        %v823 = vsel %vm821, %v814, 0.0
        %v824 = vlaneseq
        %v825 = vshrl.u32 %v824, 7
        %v826 = vsub.s32 0, %v825
        %v827 = vrot.slane %v810, %v826
        %v828 = vmul.f32 %v822, %v827
        %v829 = vmul.f32 %v823, %v827
        %v830 = vld [vmem:[#allocation11 + $0x1] sm:$0x1]
        %v831 = vlaneseq
        %v832 = vshrl.u32 %v831, 7
        %v833 = vsub.s32 0, %v832
        %v834 = vrot.slane %v830, %v833
        %v835 = vmul.f32 %v781, %v834
        %v836 = vmul.f32 %v782, %v834
        %v837 = vadd.f32 %v828, %v835
        %v838 = vadd.f32 %v829, %v836
        %v839 = vld [vmem:[#allocation11 + $0x2] sm:$0x1]
        %v840 = vrot.slane %v781, 1
        %v841 = vrot.slane %v782, 1
        %vm842 = vcmp.lt.s32.totalorder %v784, 7
        %v843 = vsel %vm842, %v840, %v841
        %v844 = vsel %vm842, %v841, %v840
        %vm845 = vcmp.lt.s32.totalorder %v808, 15
        %vm846 = vcmp.lt.s32.totalorder %v809, 15
        %v847 = vsel %vm845, 1, 0
        %v848 = vsel %vm846, 1, 0
        %vm849 = vcmp.eq.s32.totalorder %v847, 1
        %vm850 = vcmp.eq.s32.totalorder %v848, 1
        %v851 = vsel %vm849, %v843, 0.0
        %v852 = vsel %vm850, %v844, 0.0
        %v853 = vlaneseq
        %v854 = vshrl.u32 %v853, 7
        %v855 = vsub.s32 0, %v854
        %v856 = vrot.slane %v839, %v855
        %v857 = vmul.f32 %v851, %v856
        %v858 = vmul.f32 %v852, %v856
        %v859 = vadd.f32 %v837, %v857
        %v860 = vadd.f32 %v838, %v858
        %v861 = vld [vmem:[#allocation13] sm:$0x1]
        %v863 = vlaneseq
        %v864 = vshrl.u32 %v863, 7
        %v865 = vsub.s32 0, %v864
        %v866 = vrot.slane %v861, %v865
        %v868 = vadd.f32 %v859, %v866
        %v869 = vadd.f32 %v860, %v866
        %870 = vadd.xlane.f32.xlu0 %v868
        %v871 = vpop.xlane.xlu0 %870
        %872 = vadd.xlane.f32.xlu0 %v869
        %v873 = vpop.xlane.xlu0 %872
        %v874 = vmul.f32 %v868, %v868
        %v875 = vmul.f32 %v869, %v869
        %876 = vadd.xlane.f32.xlu0 %v874
        %v877 = vpop.xlane.xlu0 %876
        %878 = vadd.xlane.f32.xlu0 %v875
        %v879 = vpop.xlane.xlu0 %878
        %v880 = vadd.f32 %v871, %v873
        %v881 = vrot.slane %v880, 4
        %v882 = vadd.f32 %v880, %v881
        %v883 = vrot.slane %v882, 2
        %v884 = vadd.f32 %v882, %v883
        %v885 = vrot.slane %v884, 1
        %v886 = vadd.f32 %v884, %v885
        %v887 = vadd.f32 %v877, %v879
        %v888 = vrot.slane %v887, 4
        %v889 = vadd.f32 %v887, %v888
        %v890 = vrot.slane %v889, 2
        %v891 = vadd.f32 %v889, %v890
        %v892 = vrot.slane %v891, 1
        %v893 = vadd.f32 %v891, %v892
        %v894 = vrcp.pop 256.0
        %v895 = vmul.f32 %v886, %v894
        %v896 = vmul.f32 %v893, %v894
        %v897 = vmul.f32 %v895, %v895
        %v898 = vsub.f32 %v896, %v897
        %v899 = vadd.f32 %v898, 1e-05
        %v900 = vrsqrt.pop %v899
        %v901 = vsub.f32 %v868, %v895
        %v902 = vsub.f32 %v869, %v895
        %v903 = vmul.f32 %v901, %v900
        %v904 = vmul.f32 %v902, %v900
        %v905 = vld [vmem:[#allocation14] sm:$0x1]
        %v907 = vlaneseq
        %v908 = vshrl.u32 %v907, 7
        %v909 = vsub.s32 0, %v908
        %v910 = vrot.slane %v905, %v909
        %v912 = vmul.f32 %v903, %v910
        %v913 = vmul.f32 %v904, %v910
        %v914 = vld [vmem:[#allocation16] sm:$0x1]
        %v916 = vlaneseq
        %v917 = vshrl.u32 %v916, 7
        %v918 = vsub.s32 0, %v917
        %v919 = vrot.slane %v914, %v918
        %v921 = vadd.f32 %v912, %v919
        %v922 = vadd.f32 %v913, %v919
        %v923 = vxor.u32 %v921, 2147483648
        %v924 = vxor.u32 %v922, 2147483648
        %v925 = vmul.f32 %v923, 1.442695
        %v926 = vpow.pop %v925
        %v927 = vmul.f32 %v924, 1.442695
        %v928 = vpow.pop %v927
        %v929 = vadd.f32 %v926, 1.0
        %v930 = vadd.f32 %v928, 1.0
        %v931 = vrcp.pop %v929
        %v932 = vmul.f32 1.0, %v931
        %v933 = vrcp.pop %v930
        %v934 = vmul.f32 1.0, %v933
        %v935 = vmul.f32 %v921, %v932
        %v936 = vmul.f32 %v922, %v934
        %v937 = vpack.c.bf16 %v936, %v935
        %v938 = vld [vmem:[#allocation17] sm:$0xf]
        %v939 = vld [vmem:[#allocation17 + $0x4] sm:$0xf]
        %v940 = vld [vmem:[#allocation17 + $0x8] sm:$0xf]
        %v941 = vld [vmem:[#allocation17 + $0xc] sm:$0xf]
        %v942 = vld [vmem:[#allocation17 + $0x10] sm:$0xf]
        %v943 = vld [vmem:[#allocation17 + $0x14] sm:$0xf]
        %v944 = vld [vmem:[#allocation17 + $0x18] sm:$0xf]
        %v945 = vld [vmem:[#allocation17 + $0x1c] sm:$0xf]
        %v946 = vld [vmem:[#allocation17 + $0x20] sm:$0xf]
        %v947 = vld [vmem:[#allocation17 + $0x24] sm:$0xf]
        %v948 = vld [vmem:[#allocation17 + $0x28] sm:$0xf]
        %v949 = vld [vmem:[#allocation17 + $0x2c] sm:$0xf]
        %v950 = vld [vmem:[#allocation17 + $0x30] sm:$0xf]
        %v951 = vld [vmem:[#allocation17 + $0x34] sm:$0xf]
        %v952 = vld [vmem:[#allocation17 + $0x38] sm:$0xf]
        %v953 = vld [vmem:[#allocation17 + $0x3c] sm:$0xf]
        %v954 = vld [vmem:[#allocation19] sm:$0x1]
        %v956 = vlaneseq
        %v957 = vshrl.u32 %v956, 7
        %v958 = vsub.s32 0, %v957
        %v959 = vrot.slane %v954, %v958
        %v977 = vunpack.c.l.b16 %v938
        %v978 = vunpack.c.l.b16 %v939
        %v979 = vunpack.c.l.b16 %v940
        %v980 = vunpack.c.l.b16 %v941
        %v981 = vunpack.c.l.b16 %v942
        %v982 = vunpack.c.l.b16 %v943
        %v983 = vunpack.c.l.b16 %v944
        %v984 = vunpack.c.l.b16 %v945
        %v985 = vunpack.c.l.b16 %v946
        %v986 = vunpack.c.l.b16 %v947
        %v987 = vunpack.c.l.b16 %v948
        %v988 = vunpack.c.l.b16 %v949
        %v989 = vunpack.c.l.b16 %v950
        %v990 = vunpack.c.l.b16 %v951
        %v991 = vunpack.c.l.b16 %v952
        %v992 = vunpack.c.l.b16 %v953
        %v993 = vpack.c.b16 %v978, %v977
        %v994 = vpack.c.b16 %v980, %v979
        %v995 = vpack.c.b16 %v982, %v981
        %v996 = vpack.c.b16 %v984, %v983
        %v997 = vpack.c.b16 %v986, %v985
        %v998 = vpack.c.b16 %v988, %v987
        %v999 = vpack.c.b16 %v990, %v989
        %v1000 = vpack.c.b16 %v992, %v991
        %1009 = vmatprep.subr.bf16.mxu0 0
        %1010 = vmatpush1.bf16.msra.mxu0 %v993
        %1011 = vmatprep.subr.bf16.mxu0 0
        %1012 = vmatpush1.bf16.msra.mxu0 %v994
        %1013 = vmatprep.subr.bf16.mxu0 0
        %1014 = vmatpush1.bf16.msra.mxu0 %v995
        %1015 = vmatprep.subr.bf16.mxu0 0
        %1016 = vmatpush1.bf16.msra.mxu0 %v996
        %1017 = vmatprep.subr.bf16.mxu0 0
        %1018 = vmatpush1.bf16.msra.mxu0 %v997
        %1019 = vmatprep.subr.bf16.mxu0 0
        %1020 = vmatpush1.bf16.msra.mxu0 %v998
        %1021 = vmatprep.subr.bf16.mxu0 0
        %1022 = vmatpush1.bf16.msra.mxu0 %v999
        %1023 = vmatprep.subr.bf16.mxu0 0
        %1024 = vmatpush1.bf16.msra.mxu0 %v1000
        %1025 = vmatprep.subr.bf16.mxu0 0
        %1026 = vmatpush1.bf16.msra.mxu0 0
        %1027 = vmatprep.subr.bf16.mxu0 0
        %1028 = vmatpush1.bf16.msra.mxu0 0
        %1029 = vmatprep.subr.bf16.mxu0 0
        %1030 = vmatpush1.bf16.msra.mxu0 0
        %1031 = vmatprep.subr.bf16.mxu0 0
        %1032 = vmatpush1.bf16.msra.mxu0 0
        %1033 = vmatprep.subr.bf16.mxu0 0
        %1034 = vmatpush1.bf16.msra.mxu0 0
        %1035 = vmatprep.subr.bf16.mxu0 0
        %1036 = vmatpush1.bf16.msra.mxu0 0
        %1037 = vmatprep.subr.bf16.mxu0 0
        %1038 = vmatpush1.bf16.msra.mxu0 0
        %1039 = vmatprep.subr.bf16.mxu0 0
        %1040 = vmatpush1.bf16.msra.mxu0 0
        %1041 = vmatprep.mubr.bf16.mxu0 0
        %1042 = vmatmul.mubr.bf16.gmra.mrb[0].mxu0 %v937
        %v1043 = vpop.f32.mrb[0].mxu0
        %v1044 = vadd.f32 %v959, %v1043
        %v1045 = vpop.f32.mrb[0].mxu0
        %v1046 = vpop.f32.mrb[0].mxu0
        %v1047 = vadd.f32 %v959, %v1046
        %v1048 = vpop.f32.mrb[0].mxu0
        %1049 = vdwg.mxu0
        %1050 = vst [vmem:[%s535] sm:$0xff] %v1044
        %1051 = vst [vmem:[%s535 + $0x8] sm:$0xff] %v1047
        %s1052 = sand.u32 %s277, 1
        %s1053 = scalar_lea.sflag [#allocation4], %s1052
        %s1054 = sand.u32 %s277, 1
        %s1055 = smul.addr %s1054, 16
        %s1056 = scalar_lea.vmem [#allocation20], %s1055
        // Predicated region
        $region109: #{tpu_custom_call.1} parent=63 // pred_check
          %p1057 = pneg %p287
        $region110: #{tpu_custom_call.1} parent=63 // pred_check_branch
          %1059 = sbr.rel (%p1057) target = $region112
        $region111: #{tpu_custom_call.1} parent=63 // pred_region
          %s1061 = ssub.s32 256, 256
          %1062 = vsyncadd %s1053, %s1061
          %s1063 = smul.addr %s33, 2
          %s1064 = smul.addr %s1063, 128
          %s1065 = scalar_lea.hbm %s11, %s1064
          %s1066 = sshll.u32 %s1056, 4
          %s1067 = int_to_ptr.vmem [resolvable:$true] %s1066
          %1072 = dma.vmem_to_hbm [thread:$0]  %s1067, 256, %s1065, %s1053, 128, 128, 8
        $region112: #{tpu_custom_call.1} parent=63 // pred_fallthru
          _
      $region64: #{tpu_custom_call.1} parent=5 // pred_fallthru
        _
      %p1073 = scmp.le.s32.totalorder 2, %s28
      // Predicated region
      $region113: #{tpu_custom_call.1} parent=5 // pred_check
        %p1074 = pneg %p1073
      $region114: #{tpu_custom_call.1} parent=5 // pred_check_branch
        %1076 = sbr.rel (%p1074) target = $region116
      $region115: #{tpu_custom_call.1} parent=5 // pred_region
        %s1077 = ssub.s32 %s28, 2
        // Predicated region
        $region117: #{tpu_custom_call.1} parent=115 // pred_check
          %p1078 = pneg %p293
        $region118: #{tpu_custom_call.1} parent=115 // pred_check_branch
          %1080 = sbr.rel (%p1078) target = $region120
        $region119: #{tpu_custom_call.1} parent=115 // pred_region
          %s1081 = sand.u32 %s278, 1
          %s1082 = scalar_lea.sflag [#allocation4], %s1081
          %s1083 = sand.u32 %s278, 1
          %s1084 = smul.addr %s1083, 16
          %s1085 = scalar_lea.vmem [#allocation20], %s1084
          %1086 = dma.done %s1082, 256
        $region120: #{tpu_custom_call.1} parent=115 // pred_fallthru
          _
      $region116: #{tpu_custom_call.1} parent=5 // pred_fallthru
        _
    $region6: #{tpu_custom_call.1} parent=1 // loop_footer
      %s32 = sadd.s32 1, %s28
    $region7: #{tpu_custom_call.1} parent=1 // loop_footer_branch
      %27 = sbr.rel target = $region3
    $region8: #{tpu_custom_call.1} parent=1 // loop_exit
      _
    %1087 = vsyncpa [#allocation3], 1
    %s1088 = scalar_lea.sflag [#allocation3], 1
    %1089 = vsyncpa %s1088, 1
    %1090 = vsyncpa [#allocation6], 1
    %1091 = vsyncpa [#allocation9], 1
    %1092 = vsyncpa [#allocation12], 1
    %1093 = vsyncpa [#allocation15], 1
    %1094 = vsyncpa [#allocation18], 1
    %1095 = vsyncpa [#allocation4], 1
    %s1096 = scalar_lea.sflag [#allocation4], 1
    %1097 = vsyncpa %s1096, 1

</llo_original>
